<compile_context>
chip_gen: v7x
topology: tpu7x:2x2x1
jax: 0.10.0
libtpu: 0.0.40
codegen_flags: <defaults>
</compile_context>

<pallas_src>
import functools

import jax
import jax.numpy as jnp
from jax.experimental import pallas as pl
from jax.experimental.pallas import tpu as pltpu


def _mapping_kernel(x_ref, w_ref, b_ref, o_ref, *, num_layers: int,
                    negative_slope: float):
    """One batch tile through the whole L-layer MLP.

    x_ref: (tm, D) f32      w_ref: (L, D, D) bf16, layer l maps h -> h @ w_ref[l]
    b_ref: (L, 1, D) f32    o_ref: (tm, D) f32
    """
    h = x_ref[...].astype(jnp.float32)
    for l in range(num_layers):                        # static unroll (L is small)
        # MXU bf16 path with f32 accumulation.
        y = jnp.dot(h.astype(jnp.bfloat16), w_ref[l],
                    preferred_element_type=jnp.float32)
        y = y + b_ref[l]                               # (1, D) broadcast, f32
        h = jnp.where(y >= 0, y, negative_slope * y)   # LeakyReLU(0.2), f32
    o_ref[...] = h.astype(o_ref.dtype)


def mapping_network(x, weights_t, biases, *, tm: int = 128,
                    negative_slope: float = 0.2):
    """Pallas forward pass of MappingNetwork.

    x:         (B, D) float32
    weights_t: (L, D, D) float32, layer l maps h -> h @ weights_t[l]
               (i.e. the transpose of PyTorch's (out, in) Linear weight)
    biases:    (L, 1, D) float32
    tm:        batch tile (rows per grid step); multiple of 16 for bf16 packing.
    """
    B, D = x.shape
    L = weights_t.shape[0]
    assert weights_t.shape == (L, D, D)
    assert biases.shape == (L, 1, D)
    assert tm % 16 == 0, "bf16 sublane packing wants tm % 16 == 0"

    # Pad the batch up to a multiple of tm instead of shrinking the tile:
    # a few wasted rows in the last tile are far cheaper than tiny MXU tiles.
    pad = (-B) % tm
    xp = jnp.pad(x, ((0, pad), (0, 0))) if pad else x
    Bp = B + pad
    grid = (Bp // tm,)

    w_bf16 = weights_t.astype(jnp.bfloat16)
    b_f32 = biases.astype(jnp.float32)

    # VMEM budget: double-buffered weights/biases + double-buffered x/out tiles,
    # plus headroom.  Keeps v5e's 16 MiB default from being a cliff at D=512 and
    # stays under v7x's 64 MiB physical VMEM.
    w_bytes = L * D * D * 2          # bf16
    b_bytes = L * D * 4              # f32
    tile_bytes = tm * D * 4          # f32 x / out tile
    needed = 2 * (w_bytes + b_bytes + 2 * tile_bytes)
    vmem_limit = int(min(max(2 * needed + (8 << 20), 32 << 20), 56 << 20))

    cost = pl.CostEstimate(
        flops=2 * Bp * L * D * D,
        transcendentals=0,
        bytes_accessed=2 * Bp * D * 4 + w_bytes + b_bytes,
    )

    kernel = functools.partial(_mapping_kernel, num_layers=L,
                               negative_slope=negative_slope)
    out = pl.pallas_call(
        kernel,
        out_shape=jax.ShapeDtypeStruct((Bp, D), x.dtype),
        grid_spec=pltpu.PrefetchScalarGridSpec(
            num_scalar_prefetch=0,
            grid=grid,
            in_specs=[
                pl.BlockSpec((tm, D), lambda i: (i, 0)),        # x batch tile
                pl.BlockSpec((L, D, D), lambda i: (0, 0, 0)),   # all weights (grid-invariant)
                pl.BlockSpec((L, 1, D), lambda i: (0, 0, 0)),   # all biases  (grid-invariant)
            ],
            out_specs=pl.BlockSpec((tm, D), lambda i: (i, 0)),
        ),
        compiler_params=pltpu.CompilerParams(
            dimension_semantics=("parallel",),   # batch tiles shard across TCs on v7x
            vmem_limit_bytes=vmem_limit,
        ),
        cost_estimate=cost,
    )(xp, w_bf16, b_f32)
    return out[:B] if pad else out


def init_params(key, z_dim, w_dim, num_layers):
    """Deterministic init matching nn.Linear default (kaiming_uniform a=sqrt(5))."""
    ws, bs = [], []
    in_dim = z_dim
    for _ in range(num_layers):
        key, kw, kb = jax.random.split(key, 3)
        bound = 1.0 / jnp.sqrt(jnp.float32(in_dim))
        # PyTorch weight is (out, in); we store the transpose (in, out).
        w = jax.random.uniform(kw, (in_dim, w_dim), jnp.float32, -bound, bound)
        b = jax.random.uniform(kb, (1, w_dim), jnp.float32, -bound, bound)
        ws.append(w)
        bs.append(b)
        in_dim = w_dim
    # z_dim == w_dim here, so layers stack uniformly.
    return jnp.stack(ws, axis=0), jnp.stack(bs, axis=0)


def reference_forward(x, weights_t_bf16, biases, negative_slope=0.2):
    """Pure-JAX reference matching the kernel's bf16-matmul / f32-accumulate numerics."""
    h = x.astype(jnp.float32)
    for l in range(weights_t_bf16.shape[0]):
        y = jnp.dot(h.astype(jnp.bfloat16), weights_t_bf16[l],
                    preferred_element_type=jnp.float32) + biases[l]
        h = jnp.where(y >= 0, y, negative_slope * y)
    return h


if __name__ == "__main__":
    # Small, tile-friendly demo shapes consistent with the module
    # (real StyleGAN uses z_dim = w_dim = 512, num_layers = 8).
    Z_DIM = 128
    W_DIM = 128
    NUM_LAYERS = 8
    BATCH = 200   # deliberately not a multiple of the 128-row tile (exercises padding)

    key = jax.random.PRNGKey(0)
    k_x, k_p = jax.random.split(key)
    x = jax.random.normal(k_x, (BATCH, Z_DIM), jnp.float32)
    weights_t, biases = init_params(k_p, Z_DIM, W_DIM, NUM_LAYERS)

    out = mapping_network(x, weights_t, biases)
    out = jax.block_until_ready(out)

    ref = reference_forward(x, weights_t.astype(jnp.bfloat16), biases)
    assert out.shape == (BATCH, W_DIM)
    err = float(jnp.max(jnp.abs(out - ref)))
    assert jnp.allclose(out, ref, atol=1e-2, rtol=1e-2), f"max abs err {err}"

    print("KERNEL_OK")
</pallas_src>

<mosaic_0001>
module attributes {stable_mosaic.version = 11 : i64} {
  func.func @_mapping_kernel(%arg0: i32, %arg1: memref<128x128xf32, #tpu.memory_space<vmem>>, %arg2: memref<8x128x128xbf16, #tpu.memory_space<vmem>>, %arg3: memref<8x1x128xf32, #tpu.memory_space<vmem>>, %arg4: memref<128x128xf32, #tpu.memory_space<vmem>>) attributes {dimension_semantics = [#tpu.dimension_semantics<parallel>], iteration_bounds = array<i64: 2>, scalar_prefetch = 0 : i64, scratch_operands = 0 : i64, tpu.core_type = #tpu.core_type<tc>, window_params = [{transform_indices = @transform_0, window_bounds = array<i64: 128, 128>}, {pipeline_mode = #tpu.pipeline_mode<synchronous>, transform_indices = @transform_1, window_bounds = array<i64: 8, 128, 128>}, {pipeline_mode = #tpu.pipeline_mode<synchronous>, transform_indices = @transform_2, window_bounds = array<i64: 8, 1, 128>}, {transform_indices = @transform_3, window_bounds = array<i64: 128, 128>}]} {
    %c0 = arith.constant 0 : index
    %c0_0 = arith.constant 0 : index
    %0 = vector.load %arg1[%c0, %c0_0] : memref<128x128xf32, #tpu.memory_space<vmem>>, vector<128x128xf32>
    %1 = arith.truncf %0 : vector<128x128xf32> to vector<128x128xbf16>
    %c0_1 = arith.constant 0 : index
    %c0_2 = arith.constant 0 : index
    %c0_3 = arith.constant 0 : index
    %2 = vector.load %arg2[%c0_1, %c0_2, %c0_3] : memref<8x128x128xbf16, #tpu.memory_space<vmem>>, vector<1x128x128xbf16>
    %3 = vector.shape_cast %2 : vector<1x128x128xbf16> to vector<128x128xbf16>
    %cst = arith.constant dense<0.000000e+00> : vector<128x128xf32>
    %4 = tpu.matmul %1, %3, %cst {dimension_numbers = #tpu.dot_dimension_numbers<[1], [0], [0], [1], [0, 0, 1, 1], [], []>} : vector<128x128xbf16>, vector<128x128xbf16>, vector<128x128xf32> -> vector<128x128xf32>
    %c0_4 = arith.constant 0 : index
    %c0_5 = arith.constant 0 : index
    %c0_6 = arith.constant 0 : index
    %5 = vector.load %arg3[%c0_4, %c0_5, %c0_6] : memref<8x1x128xf32, #tpu.memory_space<vmem>>, vector<1x1x128xf32>
    %6 = vector.shape_cast %5 : vector<1x1x128xf32> to vector<1x128xf32>
    %7 = vector.broadcast %6 : vector<1x128xf32> to vector<128x128xf32>
    %8 = arith.addf %4, %7 : vector<128x128xf32>
    %cst_7 = arith.constant 0.000000e+00 : f32
    %9 = vector.broadcast %cst_7 : f32 to vector<128x128xf32>
    %10 = arith.cmpf oge, %8, %9 : vector<128x128xf32>
    %cst_8 = arith.constant 2.000000e-01 : f32
    %11 = vector.broadcast %cst_8 : f32 to vector<128x128xf32>
    %12 = arith.mulf %11, %8 : vector<128x128xf32>
    %13 = arith.select %10, %8, %12 : vector<128x128xi1>, vector<128x128xf32>
    %14 = arith.truncf %13 : vector<128x128xf32> to vector<128x128xbf16>
    %c1 = arith.constant 1 : index
    %c0_9 = arith.constant 0 : index
    %c0_10 = arith.constant 0 : index
    %15 = vector.load %arg2[%c1, %c0_9, %c0_10] : memref<8x128x128xbf16, #tpu.memory_space<vmem>>, vector<1x128x128xbf16>
    %16 = vector.shape_cast %15 : vector<1x128x128xbf16> to vector<128x128xbf16>
    %cst_11 = arith.constant dense<0.000000e+00> : vector<128x128xf32>
    %17 = tpu.matmul %14, %16, %cst_11 {dimension_numbers = #tpu.dot_dimension_numbers<[1], [0], [0], [1], [0, 0, 1, 1], [], []>} : vector<128x128xbf16>, vector<128x128xbf16>, vector<128x128xf32> -> vector<128x128xf32>
    %c1_12 = arith.constant 1 : index
    %c0_13 = arith.constant 0 : index
    %c0_14 = arith.constant 0 : index
    %18 = vector.load %arg3[%c1_12, %c0_13, %c0_14] : memref<8x1x128xf32, #tpu.memory_space<vmem>>, vector<1x1x128xf32>
    %19 = vector.shape_cast %18 : vector<1x1x128xf32> to vector<1x128xf32>
    %20 = vector.broadcast %19 : vector<1x128xf32> to vector<128x128xf32>
    %21 = arith.addf %17, %20 : vector<128x128xf32>
    %cst_15 = arith.constant 0.000000e+00 : f32
    %22 = vector.broadcast %cst_15 : f32 to vector<128x128xf32>
    %23 = arith.cmpf oge, %21, %22 : vector<128x128xf32>
    %cst_16 = arith.constant 2.000000e-01 : f32
    %24 = vector.broadcast %cst_16 : f32 to vector<128x128xf32>
    %25 = arith.mulf %24, %21 : vector<128x128xf32>
    %26 = arith.select %23, %21, %25 : vector<128x128xi1>, vector<128x128xf32>
    %27 = arith.truncf %26 : vector<128x128xf32> to vector<128x128xbf16>
    %c2 = arith.constant 2 : index
    %c0_17 = arith.constant 0 : index
    %c0_18 = arith.constant 0 : index
    %28 = vector.load %arg2[%c2, %c0_17, %c0_18] : memref<8x128x128xbf16, #tpu.memory_space<vmem>>, vector<1x128x128xbf16>
    %29 = vector.shape_cast %28 : vector<1x128x128xbf16> to vector<128x128xbf16>
    %cst_19 = arith.constant dense<0.000000e+00> : vector<128x128xf32>
    %30 = tpu.matmul %27, %29, %cst_19 {dimension_numbers = #tpu.dot_dimension_numbers<[1], [0], [0], [1], [0, 0, 1, 1], [], []>} : vector<128x128xbf16>, vector<128x128xbf16>, vector<128x128xf32> -> vector<128x128xf32>
    %c2_20 = arith.constant 2 : index
    %c0_21 = arith.constant 0 : index
    %c0_22 = arith.constant 0 : index
    %31 = vector.load %arg3[%c2_20, %c0_21, %c0_22] : memref<8x1x128xf32, #tpu.memory_space<vmem>>, vector<1x1x128xf32>
    %32 = vector.shape_cast %31 : vector<1x1x128xf32> to vector<1x128xf32>
    %33 = vector.broadcast %32 : vector<1x128xf32> to vector<128x128xf32>
    %34 = arith.addf %30, %33 : vector<128x128xf32>
    %cst_23 = arith.constant 0.000000e+00 : f32
    %35 = vector.broadcast %cst_23 : f32 to vector<128x128xf32>
    %36 = arith.cmpf oge, %34, %35 : vector<128x128xf32>
    %cst_24 = arith.constant 2.000000e-01 : f32
    %37 = vector.broadcast %cst_24 : f32 to vector<128x128xf32>
    %38 = arith.mulf %37, %34 : vector<128x128xf32>
    %39 = arith.select %36, %34, %38 : vector<128x128xi1>, vector<128x128xf32>
    %40 = arith.truncf %39 : vector<128x128xf32> to vector<128x128xbf16>
    %c3 = arith.constant 3 : index
    %c0_25 = arith.constant 0 : index
    %c0_26 = arith.constant 0 : index
    %41 = vector.load %arg2[%c3, %c0_25, %c0_26] : memref<8x128x128xbf16, #tpu.memory_space<vmem>>, vector<1x128x128xbf16>
    %42 = vector.shape_cast %41 : vector<1x128x128xbf16> to vector<128x128xbf16>
    %cst_27 = arith.constant dense<0.000000e+00> : vector<128x128xf32>
    %43 = tpu.matmul %40, %42, %cst_27 {dimension_numbers = #tpu.dot_dimension_numbers<[1], [0], [0], [1], [0, 0, 1, 1], [], []>} : vector<128x128xbf16>, vector<128x128xbf16>, vector<128x128xf32> -> vector<128x128xf32>
    %c3_28 = arith.constant 3 : index
    %c0_29 = arith.constant 0 : index
    %c0_30 = arith.constant 0 : index
    %44 = vector.load %arg3[%c3_28, %c0_29, %c0_30] : memref<8x1x128xf32, #tpu.memory_space<vmem>>, vector<1x1x128xf32>
    %45 = vector.shape_cast %44 : vector<1x1x128xf32> to vector<1x128xf32>
    %46 = vector.broadcast %45 : vector<1x128xf32> to vector<128x128xf32>
    %47 = arith.addf %43, %46 : vector<128x128xf32>
    %cst_31 = arith.constant 0.000000e+00 : f32
    %48 = vector.broadcast %cst_31 : f32 to vector<128x128xf32>
    %49 = arith.cmpf oge, %47, %48 : vector<128x128xf32>
    %cst_32 = arith.constant 2.000000e-01 : f32
    %50 = vector.broadcast %cst_32 : f32 to vector<128x128xf32>
    %51 = arith.mulf %50, %47 : vector<128x128xf32>
    %52 = arith.select %49, %47, %51 : vector<128x128xi1>, vector<128x128xf32>
    %53 = arith.truncf %52 : vector<128x128xf32> to vector<128x128xbf16>
    %c4 = arith.constant 4 : index
    %c0_33 = arith.constant 0 : index
    %c0_34 = arith.constant 0 : index
    %54 = vector.load %arg2[%c4, %c0_33, %c0_34] : memref<8x128x128xbf16, #tpu.memory_space<vmem>>, vector<1x128x128xbf16>
    %55 = vector.shape_cast %54 : vector<1x128x128xbf16> to vector<128x128xbf16>
    %cst_35 = arith.constant dense<0.000000e+00> : vector<128x128xf32>
    %56 = tpu.matmul %53, %55, %cst_35 {dimension_numbers = #tpu.dot_dimension_numbers<[1], [0], [0], [1], [0, 0, 1, 1], [], []>} : vector<128x128xbf16>, vector<128x128xbf16>, vector<128x128xf32> -> vector<128x128xf32>
    %c4_36 = arith.constant 4 : index
    %c0_37 = arith.constant 0 : index
    %c0_38 = arith.constant 0 : index
    %57 = vector.load %arg3[%c4_36, %c0_37, %c0_38] : memref<8x1x128xf32, #tpu.memory_space<vmem>>, vector<1x1x128xf32>
    %58 = vector.shape_cast %57 : vector<1x1x128xf32> to vector<1x128xf32>
    %59 = vector.broadcast %58 : vector<1x128xf32> to vector<128x128xf32>
    %60 = arith.addf %56, %59 : vector<128x128xf32>
    %cst_39 = arith.constant 0.000000e+00 : f32
    %61 = vector.broadcast %cst_39 : f32 to vector<128x128xf32>
    %62 = arith.cmpf oge, %60, %61 : vector<128x128xf32>
    %cst_40 = arith.constant 2.000000e-01 : f32
    %63 = vector.broadcast %cst_40 : f32 to vector<128x128xf32>
    %64 = arith.mulf %63, %60 : vector<128x128xf32>
    %65 = arith.select %62, %60, %64 : vector<128x128xi1>, vector<128x128xf32>
    %66 = arith.truncf %65 : vector<128x128xf32> to vector<128x128xbf16>
    %c5 = arith.constant 5 : index
    %c0_41 = arith.constant 0 : index
    %c0_42 = arith.constant 0 : index
    %67 = vector.load %arg2[%c5, %c0_41, %c0_42] : memref<8x128x128xbf16, #tpu.memory_space<vmem>>, vector<1x128x128xbf16>
    %68 = vector.shape_cast %67 : vector<1x128x128xbf16> to vector<128x128xbf16>
    %cst_43 = arith.constant dense<0.000000e+00> : vector<128x128xf32>
    %69 = tpu.matmul %66, %68, %cst_43 {dimension_numbers = #tpu.dot_dimension_numbers<[1], [0], [0], [1], [0, 0, 1, 1], [], []>} : vector<128x128xbf16>, vector<128x128xbf16>, vector<128x128xf32> -> vector<128x128xf32>
    %c5_44 = arith.constant 5 : index
    %c0_45 = arith.constant 0 : index
    %c0_46 = arith.constant 0 : index
    %70 = vector.load %arg3[%c5_44, %c0_45, %c0_46] : memref<8x1x128xf32, #tpu.memory_space<vmem>>, vector<1x1x128xf32>
    %71 = vector.shape_cast %70 : vector<1x1x128xf32> to vector<1x128xf32>
    %72 = vector.broadcast %71 : vector<1x128xf32> to vector<128x128xf32>
    %73 = arith.addf %69, %72 : vector<128x128xf32>
    %cst_47 = arith.constant 0.000000e+00 : f32
    %74 = vector.broadcast %cst_47 : f32 to vector<128x128xf32>
    %75 = arith.cmpf oge, %73, %74 : vector<128x128xf32>
    %cst_48 = arith.constant 2.000000e-01 : f32
    %76 = vector.broadcast %cst_48 : f32 to vector<128x128xf32>
    %77 = arith.mulf %76, %73 : vector<128x128xf32>
    %78 = arith.select %75, %73, %77 : vector<128x128xi1>, vector<128x128xf32>
    %79 = arith.truncf %78 : vector<128x128xf32> to vector<128x128xbf16>
    %c6 = arith.constant 6 : index
    %c0_49 = arith.constant 0 : index
    %c0_50 = arith.constant 0 : index
    %80 = vector.load %arg2[%c6, %c0_49, %c0_50] : memref<8x128x128xbf16, #tpu.memory_space<vmem>>, vector<1x128x128xbf16>
    %81 = vector.shape_cast %80 : vector<1x128x128xbf16> to vector<128x128xbf16>
    %cst_51 = arith.constant dense<0.000000e+00> : vector<128x128xf32>
    %82 = tpu.matmul %79, %81, %cst_51 {dimension_numbers = #tpu.dot_dimension_numbers<[1], [0], [0], [1], [0, 0, 1, 1], [], []>} : vector<128x128xbf16>, vector<128x128xbf16>, vector<128x128xf32> -> vector<128x128xf32>
    %c6_52 = arith.constant 6 : index
    %c0_53 = arith.constant 0 : index
    %c0_54 = arith.constant 0 : index
    %83 = vector.load %arg3[%c6_52, %c0_53, %c0_54] : memref<8x1x128xf32, #tpu.memory_space<vmem>>, vector<1x1x128xf32>
    %84 = vector.shape_cast %83 : vector<1x1x128xf32> to vector<1x128xf32>
    %85 = vector.broadcast %84 : vector<1x128xf32> to vector<128x128xf32>
    %86 = arith.addf %82, %85 : vector<128x128xf32>
    %cst_55 = arith.constant 0.000000e+00 : f32
    %87 = vector.broadcast %cst_55 : f32 to vector<128x128xf32>
    %88 = arith.cmpf oge, %86, %87 : vector<128x128xf32>
    %cst_56 = arith.constant 2.000000e-01 : f32
    %89 = vector.broadcast %cst_56 : f32 to vector<128x128xf32>
    %90 = arith.mulf %89, %86 : vector<128x128xf32>
    %91 = arith.select %88, %86, %90 : vector<128x128xi1>, vector<128x128xf32>
    %92 = arith.truncf %91 : vector<128x128xf32> to vector<128x128xbf16>
    %c7 = arith.constant 7 : index
    %c0_57 = arith.constant 0 : index
    %c0_58 = arith.constant 0 : index
    %93 = vector.load %arg2[%c7, %c0_57, %c0_58] : memref<8x128x128xbf16, #tpu.memory_space<vmem>>, vector<1x128x128xbf16>
    %94 = vector.shape_cast %93 : vector<1x128x128xbf16> to vector<128x128xbf16>
    %cst_59 = arith.constant dense<0.000000e+00> : vector<128x128xf32>
    %95 = tpu.matmul %92, %94, %cst_59 {dimension_numbers = #tpu.dot_dimension_numbers<[1], [0], [0], [1], [0, 0, 1, 1], [], []>} : vector<128x128xbf16>, vector<128x128xbf16>, vector<128x128xf32> -> vector<128x128xf32>
    %c7_60 = arith.constant 7 : index
    %c0_61 = arith.constant 0 : index
    %c0_62 = arith.constant 0 : index
    %96 = vector.load %arg3[%c7_60, %c0_61, %c0_62] : memref<8x1x128xf32, #tpu.memory_space<vmem>>, vector<1x1x128xf32>
    %97 = vector.shape_cast %96 : vector<1x1x128xf32> to vector<1x128xf32>
    %98 = vector.broadcast %97 : vector<1x128xf32> to vector<128x128xf32>
    %99 = arith.addf %95, %98 : vector<128x128xf32>
    %cst_63 = arith.constant 0.000000e+00 : f32
    %100 = vector.broadcast %cst_63 : f32 to vector<128x128xf32>
    %101 = arith.cmpf oge, %99, %100 : vector<128x128xf32>
    %cst_64 = arith.constant 2.000000e-01 : f32
    %102 = vector.broadcast %cst_64 : f32 to vector<128x128xf32>
    %103 = arith.mulf %102, %99 : vector<128x128xf32>
    %104 = arith.select %101, %99, %103 : vector<128x128xi1>, vector<128x128xf32>
    %c0_65 = arith.constant 0 : index
    %c0_66 = arith.constant 0 : index
    %105 = vector.load %arg4[%c0_65, %c0_66] : memref<128x128xf32, #tpu.memory_space<vmem>>, vector<128x128xf32>
    tpu.vector_store %arg4[%c0_65, %c0_66], %104 {strides = array<i32>} : memref<128x128xf32, #tpu.memory_space<vmem>>, vector<128x128xf32>,
    return
  }
  func.func @transform_0(%arg0: i32) -> (i32, i32) {
    %c0_i32 = arith.constant 0 : i32
    %c0_i32_0 = arith.constant 0 : i32
    return %arg0, %c0_i32 : i32, i32
  }
  func.func @transform_1(%arg0: i32) -> (i32, i32, i32) {
    %c0_i32 = arith.constant 0 : i32
    %c0_i32_0 = arith.constant 0 : i32
    %c0_i32_1 = arith.constant 0 : i32
    %c0_i32_2 = arith.constant 0 : i32
    return %c0_i32, %c0_i32_0, %c0_i32_1 : i32, i32, i32
  }
  func.func @transform_2(%arg0: i32) -> (i32, i32, i32) {
    %c0_i32 = arith.constant 0 : i32
    %c0_i32_0 = arith.constant 0 : i32
    %c0_i32_1 = arith.constant 0 : i32
    %c0_i32_2 = arith.constant 0 : i32
    return %c0_i32, %c0_i32_0, %c0_i32_1 : i32, i32, i32
  }
  func.func @transform_3(%arg0: i32) -> (i32, i32) {
    %c0_i32 = arith.constant 0 : i32
    %c0_i32_0 = arith.constant 0 : i32
    return %arg0, %c0_i32 : i32, i32
  }
}

</mosaic_0001>

<llo_original>
// kernel: tpu_custom_call.1
$region0: #{tpu_custom_call.1}
  #allocation0 [shape = 'u32[]', space=smem, size = 0x4, offset = 0x4, fixed_abs, tag = 'smem constant byte address 0x4 - core index']
  #allocation1 [shape = 'u32[144,128]{1,0:T(1,128)}', space=vmem, size = 0x12000, scoped, tag = 'internal scratch']
  %s0 = inlined_call_operand.hbm [shape: f32[256,128], index: 0, kind: input, shape index: {}]
  %s1 = inlined_call_operand.hbm [shape: bf16[8,128,128], index: 1, kind: input, shape index: {}]
  %s2 = inlined_call_operand.hbm [shape: f32[8,1,128], index: 2, kind: input, shape index: {}]
  %s3 = inlined_call_operand.hbm [shape: f32[256,128], index: 3, kind: output, shape index: {}]
  %s4 = sld [smem:[#allocation0]]
  $region57: #{tpu_custom_call.1} parent=0
    _
  %s6 = ssub.s32 1, %s4
  %s7 = scalar_select 0, %s6, %s4
  $region1: #{tpu_custom_call.1} parent=0
    #allocation2 [shape = 'u8[131072]{0}', space=vmem, size = 0x20000, scoped, tag = 'input window, operand 0']
    #allocation3 [shape = 's32[2]{0}', space=sflag, size = 0x8, scoped, tag = 'scoped memory for tpu_custom_call.1']
    #allocation4 [shape = 's32[2]{0}', space=sflag, size = 0x8, scoped, tag = 'scoped memory for tpu_custom_call.1']
    #allocation5 [shape = 'u8[262144]{0}', space=vmem, size = 0x40000, scoped, tag = 'input window, operand 1, single buffered']
    #allocation6 [shape = 's32[1]{0}', space=sflag, size = 0x4, scoped, tag = 'scoped memory for tpu_custom_call.1']
    #allocation7 [shape = 'u8[4096]{0}', space=vmem, size = 0x1000, scoped, tag = 'input window, operand 2, single buffered']
    #allocation8 [shape = 'u8[131072]{0}', space=vmem, size = 0x20000, scoped, tag = 'output window, operand 0']
    %8 = vsyncpa [#allocation3], 0
    %s9 = scalar_lea.sflag [#allocation3], 1
    %10 = vsyncpa %s9, 0
    %11 = vsyncpa [#allocation6], 0
    %12 = vsyncpa [#allocation4], 0
    %s13 = scalar_lea.sflag [#allocation4], 1
    %14 = vsyncpa %s13, 0
    loop: start=0, step=1, limit=4
    $region2: #{tpu_custom_call.1} parent=1 // loop_pre_header
      _
    $region3: #{tpu_custom_call.1} parent=1 // loop_header
      %s16 = sphi 0, %s20
      %p17 = scmp.ge.s32.totalorder %s16, 4
      %s26 = sphi 0, %s28
      %s29 = sphi 0, %s26
      %s30 = sphi 0, %s29
      %s46 = sphi 0, %s30
      %s50 = sphi 0, %s50
      %s52 = sphi 0, %s50
      %s53 = sphi 0, %s52
      %s67 = sphi 0, %s53
      %s71 = sphi 0, %s71
      %s73 = sphi 0, %s71
      %s74 = sphi 0, %s73
      %s88 = sphi 0, %s74
      %s94 = sphi 0, %s96
      %s97 = sphi 0, %s94
      %s98 = sphi 0, %s97
      %s114 = sphi 0, %s98
    $region4: #{tpu_custom_call.1} parent=1 // loop_header_branch
      %19 = sbr.rel (%p17) target = $region8
    $region5: #{tpu_custom_call.1} parent=1 // loop_body
      %s21 = ssub.s32 %s16, 1
      %s22 = ssub.s32 %s16, 2
      %s23 = sadd.s32 %s16, 1
      %s24 = ssub.s32 %s16, %s23
      %p25 = scmp.eq.s32.totalorder %s24, 0
      %s27 = sadd.s32 %s26, 1
      %s28 = scalar_select %p25, %s26, %s27
      %p31 = pneg %p25
      %p32 = scmp.eq.s32.totalorder %s16, 1
      %p33 = por %p31, %p32
      %p34 = scmp.ne.s32.totalorder %s26, %s29
      %p35 = scmp.eq.s32.totalorder %s16, 0
      %p36 = por %p34, %p35
      %p37 = scmp.ne.s32.totalorder %s26, %s29
      %p38 = scmp.eq.s32.totalorder %s21, 1
      %p39 = por %p37, %p38
      %p40 = scmp.ne.s32.totalorder %s29, %s30
      %p41 = scmp.eq.s32.totalorder %s21, 0
      %p42 = por %p40, %p41
      %p43 = scmp.ne.s32.totalorder %s29, %s30
      %p44 = scmp.eq.s32.totalorder %s22, 1
      %p45 = por %p43, %p44
      %p47 = scmp.ne.s32.totalorder %s30, %s46
      %p48 = scmp.eq.s32.totalorder %s22, 0
      %p49 = por %p47, %p48
      %s51 = sadd.s32 %s50, 1
      %p54 = scmp.eq.s32.totalorder %s16, 1
      %p55 = scmp.ne.s32.totalorder %s50, %s52
      %p56 = scmp.eq.s32.totalorder %s16, 0
      %p57 = por %p55, %p56
      %p58 = scmp.ne.s32.totalorder %s50, %s52
      %p59 = scmp.eq.s32.totalorder %s21, 1
      %p60 = por %p58, %p59
      %p61 = scmp.ne.s32.totalorder %s52, %s53
      %p62 = scmp.eq.s32.totalorder %s21, 0
      %p63 = por %p61, %p62
      %p64 = scmp.ne.s32.totalorder %s52, %s53
      %p65 = scmp.eq.s32.totalorder %s22, 1
      %p66 = por %p64, %p65
      %p68 = scmp.ne.s32.totalorder %s53, %s67
      %p69 = scmp.eq.s32.totalorder %s22, 0
      %p70 = por %p68, %p69
      %s72 = sadd.s32 %s71, 1
      %p75 = scmp.eq.s32.totalorder %s16, 1
      %p76 = scmp.ne.s32.totalorder %s71, %s73
      %p77 = scmp.eq.s32.totalorder %s16, 0
      %p78 = por %p76, %p77
      %p79 = scmp.ne.s32.totalorder %s71, %s73
      %p80 = scmp.eq.s32.totalorder %s21, 1
      %p81 = por %p79, %p80
      %p82 = scmp.ne.s32.totalorder %s73, %s74
      %p83 = scmp.eq.s32.totalorder %s21, 0
      %p84 = por %p82, %p83
      %p85 = scmp.ne.s32.totalorder %s73, %s74
      %p86 = scmp.eq.s32.totalorder %s22, 1
      %p87 = por %p85, %p86
      %p89 = scmp.ne.s32.totalorder %s74, %s88
      %p90 = scmp.eq.s32.totalorder %s22, 0
      %p91 = por %p89, %p90
      %s92 = ssub.s32 %s16, %s23
      %p93 = scmp.eq.s32.totalorder %s92, 0
      %s95 = sadd.s32 %s94, 1
      %s96 = scalar_select %p93, %s94, %s95
      %p99 = pneg %p93
      %p100 = scmp.eq.s32.totalorder %s16, 1
      %p101 = por %p99, %p100
      %p102 = scmp.ne.s32.totalorder %s94, %s97
      %p103 = scmp.eq.s32.totalorder %s16, 0
      %p104 = por %p102, %p103
      %p105 = scmp.ne.s32.totalorder %s94, %s97
      %p106 = scmp.eq.s32.totalorder %s21, 1
      %p107 = por %p105, %p106
      %p108 = scmp.ne.s32.totalorder %s97, %s98
      %p109 = scmp.eq.s32.totalorder %s21, 0
      %p110 = por %p108, %p109
      %p111 = scmp.ne.s32.totalorder %s97, %s98
      %p112 = scmp.eq.s32.totalorder %s22, 1
      %p113 = por %p111, %p112
      %p115 = scmp.ne.s32.totalorder %s98, %s114
      %p116 = scmp.eq.s32.totalorder %s22, 0
      %p117 = por %p115, %p116
      %p118 = scmp.le.s32.totalorder 1, %s16
      %p119 = scmp.lt.s32.totalorder %s16, 3
      %p120 = pnand %p118, %p119
      %p121 = pneg %p120
      // Predicated region
      $region9: #{tpu_custom_call.1} parent=5 // pred_check
        _
      $region10: #{tpu_custom_call.1} parent=5 // pred_check_branch
        %123 = sbr.rel (%p120) target = $region12
      $region11: #{tpu_custom_call.1} parent=5 // pred_region
        %s124 = ssub.s32 %s16, 1
        // Predicated region
        $region13: #{tpu_custom_call.1} parent=11 // pred_check
          %p125 = pneg %p63
        $region14: #{tpu_custom_call.1} parent=11 // pred_check_branch
          %127 = sbr.rel (%p125) target = $region16
        $region15: #{tpu_custom_call.1} parent=11 // pred_region
          %s129 = ssub.s32 8192, 8192
          %130 = vsyncadd [#allocation6], %s129
          %s131 = sshll.u32 [#allocation5], 4
          %s132 = int_to_ptr.vmem [resolvable:$true] %s131
          %137 = dma.hbm_to_vmem [thread:$0]  %s1, 8192, %s132, [#allocation6], 64, 64, 4
        $region16: #{tpu_custom_call.1} parent=11 // pred_fallthru
          _
        // Predicated region
        $region17: #{tpu_custom_call.1} parent=11 // pred_check
          %p138 = pneg %p84
        $region18: #{tpu_custom_call.1} parent=11 // pred_check_branch
          %140 = sbr.rel (%p138) target = $region20
        $region19: #{tpu_custom_call.1} parent=11 // pred_region
          %s142 = ssub.s32 128, 128
          %143 = vsyncadd [#allocation6], %s142
          %s144 = sshll.u32 [#allocation7], 4
          %s145 = int_to_ptr.vmem [resolvable:$true] %s144
          %150 = dma.hbm_to_vmem [thread:$0]  %s2, 128, %s145, [#allocation6], 16, 16, 1
        $region20: #{tpu_custom_call.1} parent=11 // pred_fallthru
          _
      $region12: #{tpu_custom_call.1} parent=5 // pred_fallthru
        _
      %p151 = scmp.lt.s32.totalorder %s16, 2
      // Predicated region
      $region21: #{tpu_custom_call.1} parent=5 // pred_check
        %p152 = pneg %p151
      $region22: #{tpu_custom_call.1} parent=5 // pred_check_branch
        %154 = sbr.rel (%p152) target = $region24
      $region23: #{tpu_custom_call.1} parent=5 // pred_region
        // Predicated region
        $region25: #{tpu_custom_call.1} parent=23 // pred_check
          %p155 = pneg %p36
        $region26: #{tpu_custom_call.1} parent=23 // pred_check_branch
          %157 = sbr.rel (%p155) target = $region28
        $region27: #{tpu_custom_call.1} parent=23 // pred_region
          %s158 = sand.u32 %s26, 1
          %s159 = scalar_lea.sflag [#allocation3], %s158
          %s160 = sand.u32 %s26, 1
          %s161 = smul.addr %s160, 128
          %s162 = scalar_lea.vmem [#allocation2], %s161
          %s163 = smul.u32 16, %s16
          %s165 = ssub.s32 2048, 2048
          %166 = vsyncadd %s159, %s165
          %s167 = smul.addr %s163, 128
          %s168 = scalar_lea.hbm %s0, %s167
          %s169 = sshll.u32 %s162, 4
          %s170 = int_to_ptr.vmem [resolvable:$true] %s169
          %175 = dma.hbm_to_vmem [thread:$0]  %s168, 2048, %s170, %s159, 128, 128, 8
        $region28: #{tpu_custom_call.1} parent=23 // pred_fallthru
          _
      $region24: #{tpu_custom_call.1} parent=5 // pred_fallthru
        _
      %p176 = scmp.le.s32.totalorder 1, %s16
      %p177 = scmp.lt.s32.totalorder %s16, 3
      %p178 = pnand %p176, %p177
      %p179 = pneg %p178
      // Predicated region
      $region29: #{tpu_custom_call.1} parent=5 // pred_check
        _
      $region30: #{tpu_custom_call.1} parent=5 // pred_check_branch
        %181 = sbr.rel (%p178) target = $region32
      $region31: #{tpu_custom_call.1} parent=5 // pred_region
        %s182 = ssub.s32 %s16, 1
        %s183 = sand.u32 %s29, 1
        %s184 = scalar_lea.sflag [#allocation3], %s183
        %s185 = sand.u32 %s29, 1
        %s186 = smul.addr %s185, 128
        %s187 = scalar_lea.vmem [#allocation2], %s186
        // Predicated region
        $region33: #{tpu_custom_call.1} parent=31 // pred_check
          %p188 = pneg %p42
        $region34: #{tpu_custom_call.1} parent=31 // pred_check_branch
          %190 = sbr.rel (%p188) target = $region36
        $region35: #{tpu_custom_call.1} parent=31 // pred_region
          %191 = dma.done %s184, 2048
        $region36: #{tpu_custom_call.1} parent=31 // pred_fallthru
          _
        // Predicated region
        $region37: #{tpu_custom_call.1} parent=31 // pred_check
          %p192 = pneg %p63
        $region38: #{tpu_custom_call.1} parent=31 // pred_check_branch
          %194 = sbr.rel (%p192) target = $region40
        $region39: #{tpu_custom_call.1} parent=31 // pred_region
          %195 = dma.done [#allocation6], 8192
        $region40: #{tpu_custom_call.1} parent=31 // pred_fallthru
          _
        // Predicated region
        $region41: #{tpu_custom_call.1} parent=31 // pred_check
          %p196 = pneg %p84
        $region42: #{tpu_custom_call.1} parent=31 // pred_check_branch
          %198 = sbr.rel (%p196) target = $region44
        $region43: #{tpu_custom_call.1} parent=31 // pred_region
          %199 = dma.done [#allocation6], 128
        $region44: #{tpu_custom_call.1} parent=31 // pred_fallthru
          _
        %s200 = sand.u32 %s29, 1
        %s201 = scalar_lea.sflag [#allocation3], %s200
        %s202 = sand.u32 %s29, 1
        %s203 = smul.addr %s202, 128
        %s204 = scalar_lea.vmem [#allocation2], %s203
        %p205 = pneg %p42
        %p206 = pneg %p39
        %p207 = pneg %p63
        %p208 = pneg %p60
        %p209 = pneg %p84
        %p210 = pneg %p81
        %p211 = pneg %p110
        %p212 = pneg %p107
        %s213 = sand.u32 %s97, 1
        %s214 = scalar_lea.sflag [#allocation4], %s213
        %s215 = sand.u32 %s97, 1
        %s216 = smul.addr %s215, 128
        %s217 = scalar_lea.vmem [#allocation8], %s216
        %s218 = smul.u32 16, %s21
        %s219 = smul.u32 16, %s21
        %v221 = vld [vmem:[%s187] sm:$0xff]
        %v222 = vld [vmem:[%s187 + $0x8] sm:$0xff]
        %v223 = vld [vmem:[%s187 + $0x10] sm:$0xff]
        %v224 = vld [vmem:[%s187 + $0x18] sm:$0xff]
        %v225 = vld [vmem:[%s187 + $0x20] sm:$0xff]
        %v226 = vld [vmem:[%s187 + $0x28] sm:$0xff]
        %v227 = vld [vmem:[%s187 + $0x30] sm:$0xff]
        %v228 = vld [vmem:[%s187 + $0x38] sm:$0xff]
        %v229 = vld [vmem:[%s187 + $0x40] sm:$0xff]
        %v230 = vld [vmem:[%s187 + $0x48] sm:$0xff]
        %v231 = vld [vmem:[%s187 + $0x50] sm:$0xff]
        %v232 = vld [vmem:[%s187 + $0x58] sm:$0xff]
        %v233 = vld [vmem:[%s187 + $0x60] sm:$0xff]
        %v234 = vld [vmem:[%s187 + $0x68] sm:$0xff]
        %v235 = vld [vmem:[%s187 + $0x70] sm:$0xff]
        %v236 = vld [vmem:[%s187 + $0x78] sm:$0xff]
        %v237 = vpack.c.bf16 %v222, %v221
        %v238 = vpack.c.bf16 %v224, %v223
        %v239 = vpack.c.bf16 %v226, %v225
        %v240 = vpack.c.bf16 %v228, %v227
        %v241 = vpack.c.bf16 %v230, %v229
        %v242 = vpack.c.bf16 %v232, %v231
        %v243 = vpack.c.bf16 %v234, %v233
        %v244 = vpack.c.bf16 %v236, %v235
        %v245 = vld [vmem:[#allocation5] sm:$0xf]
        %v246 = vld [vmem:[#allocation5 + $0x4] sm:$0xf]
        %v247 = vld [vmem:[#allocation5 + $0x8] sm:$0xf]
        %v248 = vld [vmem:[#allocation5 + $0xc] sm:$0xf]
        %v249 = vld [vmem:[#allocation5 + $0x10] sm:$0xf]
        %v250 = vld [vmem:[#allocation5 + $0x14] sm:$0xf]
        %v251 = vld [vmem:[#allocation5 + $0x18] sm:$0xf]
        %v252 = vld [vmem:[#allocation5 + $0x1c] sm:$0xf]
        %v253 = vld [vmem:[#allocation5 + $0x20] sm:$0xf]
        %v254 = vld [vmem:[#allocation5 + $0x24] sm:$0xf]
        %v255 = vld [vmem:[#allocation5 + $0x28] sm:$0xf]
        %v256 = vld [vmem:[#allocation5 + $0x2c] sm:$0xf]
        %v257 = vld [vmem:[#allocation5 + $0x30] sm:$0xf]
        %v258 = vld [vmem:[#allocation5 + $0x34] sm:$0xf]
        %v259 = vld [vmem:[#allocation5 + $0x38] sm:$0xf]
        %v260 = vld [vmem:[#allocation5 + $0x3c] sm:$0xf]
        %v261 = vld [vmem:[#allocation7] sm:$0x1]
        %v263 = vlaneseq
        %v264 = vshrl.u32 %v263, 7
        %v265 = vsub.s32 0, %v264
        %v266 = vrot.slane %v261, %v265
        %v284 = vunpack.c.l.b16 %v245
        %v285 = vunpack.c.l.b16 %v246
        %v286 = vunpack.c.l.b16 %v247
        %v287 = vunpack.c.l.b16 %v248
        %v288 = vunpack.c.l.b16 %v249
        %v289 = vunpack.c.l.b16 %v250
        %v290 = vunpack.c.l.b16 %v251
        %v291 = vunpack.c.l.b16 %v252
        %v292 = vunpack.c.l.b16 %v253
        %v293 = vunpack.c.l.b16 %v254
        %v294 = vunpack.c.l.b16 %v255
        %v295 = vunpack.c.l.b16 %v256
        %v296 = vunpack.c.l.b16 %v257
        %v297 = vunpack.c.l.b16 %v258
        %v298 = vunpack.c.l.b16 %v259
        %v299 = vunpack.c.l.b16 %v260
        %v300 = vpack.c.b16 %v285, %v284
        %v301 = vpack.c.b16 %v287, %v286
        %v302 = vpack.c.b16 %v289, %v288
        %v303 = vpack.c.b16 %v291, %v290
        %v304 = vpack.c.b16 %v293, %v292
        %v305 = vpack.c.b16 %v295, %v294
        %v306 = vpack.c.b16 %v297, %v296
        %v307 = vpack.c.b16 %v299, %v298
        %316 = vmatprep.subr.bf16.mxu0 0
        %317 = vmatpush1.bf16.msra.mxu0 %v300
        %318 = vmatprep.subr.bf16.mxu0 0
        %319 = vmatpush1.bf16.msra.mxu0 %v301
        %320 = vmatprep.subr.bf16.mxu0 0
        %321 = vmatpush1.bf16.msra.mxu0 %v302
        %322 = vmatprep.subr.bf16.mxu0 0
        %323 = vmatpush1.bf16.msra.mxu0 %v303
        %324 = vmatprep.subr.bf16.mxu0 0
        %325 = vmatpush1.bf16.msra.mxu0 %v304
        %326 = vmatprep.subr.bf16.mxu0 0
        %327 = vmatpush1.bf16.msra.mxu0 %v305
        %328 = vmatprep.subr.bf16.mxu0 0
        %329 = vmatpush1.bf16.msra.mxu0 %v306
        %330 = vmatprep.subr.bf16.mxu0 0
        %331 = vmatpush1.bf16.msra.mxu0 %v307
        %332 = vmatprep.subr.bf16.mxu0 0
        %333 = vmatpush1.bf16.msra.mxu0 0
        %334 = vmatprep.subr.bf16.mxu0 0
        %335 = vmatpush1.bf16.msra.mxu0 0
        %336 = vmatprep.subr.bf16.mxu0 0
        %337 = vmatpush1.bf16.msra.mxu0 0
        %338 = vmatprep.subr.bf16.mxu0 0
        %339 = vmatpush1.bf16.msra.mxu0 0
        %340 = vmatprep.subr.bf16.mxu0 0
        %341 = vmatpush1.bf16.msra.mxu0 0
        %342 = vmatprep.subr.bf16.mxu0 0
        %343 = vmatpush1.bf16.msra.mxu0 0
        %344 = vmatprep.subr.bf16.mxu0 0
        %345 = vmatpush1.bf16.msra.mxu0 0
        %346 = vmatprep.subr.bf16.mxu0 0
        %347 = vmatpush1.bf16.msra.mxu0 0
        %348 = vmatprep.mubr.bf16.mxu0 0
        %349 = vmatmul.mubr.bf16.gmra.mrb[0].mxu0 %v237
        %v350 = vpop.f32.mrb[0].mxu0
        %v351 = vadd.f32 %v266, %v350
        %v352 = vpop.f32.mrb[0].mxu0
        %v353 = vpop.f32.mrb[0].mxu0
        %v354 = vadd.f32 %v266, %v353
        %v355 = vpop.f32.mrb[0].mxu0
        %356 = vmatprep.mubr.bf16.mxu0 0
        %357 = vmatmul.mubr.bf16.gmra.mrb[0].mxu0 %v238
        %v358 = vpop.f32.mrb[0].mxu0
        %v359 = vadd.f32 %v266, %v358
        %v360 = vpop.f32.mrb[0].mxu0
        %v361 = vpop.f32.mrb[0].mxu0
        %v362 = vadd.f32 %v266, %v361
        %v363 = vpop.f32.mrb[0].mxu0
        %364 = vmatprep.mubr.bf16.mxu0 0
        %365 = vmatmul.mubr.bf16.gmra.mrb[0].mxu0 %v239
        %v366 = vpop.f32.mrb[0].mxu0
        %v367 = vadd.f32 %v266, %v366
        %v368 = vpop.f32.mrb[0].mxu0
        %v369 = vpop.f32.mrb[0].mxu0
        %v370 = vadd.f32 %v266, %v369
        %v371 = vpop.f32.mrb[0].mxu0
        %372 = vmatprep.mubr.bf16.mxu0 0
        %373 = vmatmul.mubr.bf16.gmra.mrb[0].mxu0 %v240
        %v374 = vpop.f32.mrb[0].mxu0
        %v375 = vadd.f32 %v266, %v374
        %v376 = vpop.f32.mrb[0].mxu0
        %v377 = vpop.f32.mrb[0].mxu0
        %v378 = vadd.f32 %v266, %v377
        %v379 = vpop.f32.mrb[0].mxu0
        %380 = vmatprep.mubr.bf16.mxu0 0
        %381 = vmatmul.mubr.bf16.gmra.mrb[0].mxu0 %v241
        %v382 = vpop.f32.mrb[0].mxu0
        %v383 = vadd.f32 %v266, %v382
        %v384 = vpop.f32.mrb[0].mxu0
        %v385 = vpop.f32.mrb[0].mxu0
        %v386 = vadd.f32 %v266, %v385
        %v387 = vpop.f32.mrb[0].mxu0
        %388 = vmatprep.mubr.bf16.mxu0 0
        %389 = vmatmul.mubr.bf16.gmra.mrb[0].mxu0 %v242
        %v390 = vpop.f32.mrb[0].mxu0
        %v391 = vadd.f32 %v266, %v390
        %v392 = vpop.f32.mrb[0].mxu0
        %v393 = vpop.f32.mrb[0].mxu0
        %v394 = vadd.f32 %v266, %v393
        %v395 = vpop.f32.mrb[0].mxu0
        %396 = vmatprep.mubr.bf16.mxu0 0
        %397 = vmatmul.mubr.bf16.gmra.mrb[0].mxu0 %v243
        %v398 = vpop.f32.mrb[0].mxu0
        %v399 = vadd.f32 %v266, %v398
        %v400 = vpop.f32.mrb[0].mxu0
        %v401 = vpop.f32.mrb[0].mxu0
        %v402 = vadd.f32 %v266, %v401
        %v403 = vpop.f32.mrb[0].mxu0
        %404 = vmatprep.mubr.bf16.mxu0 0
        %405 = vmatmul.mubr.bf16.gmra.mrb[0].mxu0 %v244
        %v406 = vpop.f32.mrb[0].mxu0
        %v407 = vadd.f32 %v266, %v406
        %v408 = vpop.f32.mrb[0].mxu0
        %v409 = vpop.f32.mrb[0].mxu0
        %v410 = vadd.f32 %v266, %v409
        %v411 = vpop.f32.mrb[0].mxu0
        %412 = vdwg.mxu0
        %vm413 = vcmp.ge.f32.partialorder %v351, 0.0
        %vm414 = vcmp.ge.f32.partialorder %v354, 0.0
        %vm415 = vcmp.ge.f32.partialorder %v359, 0.0
        %vm416 = vcmp.ge.f32.partialorder %v362, 0.0
        %vm417 = vcmp.ge.f32.partialorder %v367, 0.0
        %vm418 = vcmp.ge.f32.partialorder %v370, 0.0
        %vm419 = vcmp.ge.f32.partialorder %v375, 0.0
        %vm420 = vcmp.ge.f32.partialorder %v378, 0.0
        %vm421 = vcmp.ge.f32.partialorder %v383, 0.0
        %vm422 = vcmp.ge.f32.partialorder %v386, 0.0
        %vm423 = vcmp.ge.f32.partialorder %v391, 0.0
        %vm424 = vcmp.ge.f32.partialorder %v394, 0.0
        %vm425 = vcmp.ge.f32.partialorder %v399, 0.0
        %vm426 = vcmp.ge.f32.partialorder %v402, 0.0
        %vm427 = vcmp.ge.f32.partialorder %v407, 0.0
        %vm428 = vcmp.ge.f32.partialorder %v410, 0.0
        %v429 = vmul.f32 %v351, 0.2
        %v430 = vmul.f32 %v354, 0.2
        %v431 = vmul.f32 %v359, 0.2
        %v432 = vmul.f32 %v362, 0.2
        %v433 = vmul.f32 %v367, 0.2
        %v434 = vmul.f32 %v370, 0.2
        %v435 = vmul.f32 %v375, 0.2
        %v436 = vmul.f32 %v378, 0.2
        %v437 = vmul.f32 %v383, 0.2
        %v438 = vmul.f32 %v386, 0.2
        %v439 = vmul.f32 %v391, 0.2
        %v440 = vmul.f32 %v394, 0.2
        %v441 = vmul.f32 %v399, 0.2
        %v442 = vmul.f32 %v402, 0.2
        %v443 = vmul.f32 %v407, 0.2
        %v444 = vmul.f32 %v410, 0.2
        %v445 = vsel %vm413, %v351, %v429
        %v446 = vsel %vm414, %v354, %v430
        %v447 = vsel %vm415, %v359, %v431
        %v448 = vsel %vm416, %v362, %v432
        %v449 = vsel %vm417, %v367, %v433
        %v450 = vsel %vm418, %v370, %v434
        %v451 = vsel %vm419, %v375, %v435
        %v452 = vsel %vm420, %v378, %v436
        %v453 = vsel %vm421, %v383, %v437
        %v454 = vsel %vm422, %v386, %v438
        %v455 = vsel %vm423, %v391, %v439
        %v456 = vsel %vm424, %v394, %v440
        %v457 = vsel %vm425, %v399, %v441
        %v458 = vsel %vm426, %v402, %v442
        %v459 = vsel %vm427, %v407, %v443
        %v460 = vsel %vm428, %v410, %v444
        %v461 = vpack.c.bf16 %v446, %v445
        %v462 = vpack.c.bf16 %v448, %v447
        %v463 = vpack.c.bf16 %v450, %v449
        %v464 = vpack.c.bf16 %v452, %v451
        %v465 = vpack.c.bf16 %v454, %v453
        %v466 = vpack.c.bf16 %v456, %v455
        %v467 = vpack.c.bf16 %v458, %v457
        %v468 = vpack.c.bf16 %v460, %v459
        %s469 = scalar_lea.vmem [#allocation5], 64
        %v470 = vld [vmem:[%s469] sm:$0xf]
        %v471 = vld [vmem:[%s469 + $0x4] sm:$0xf]
        %v472 = vld [vmem:[%s469 + $0x8] sm:$0xf]
        %v473 = vld [vmem:[%s469 + $0xc] sm:$0xf]
        %v474 = vld [vmem:[%s469 + $0x10] sm:$0xf]
        %v475 = vld [vmem:[%s469 + $0x14] sm:$0xf]
        %v476 = vld [vmem:[%s469 + $0x18] sm:$0xf]
        %v477 = vld [vmem:[%s469 + $0x1c] sm:$0xf]
        %v478 = vld [vmem:[%s469 + $0x20] sm:$0xf]
        %v479 = vld [vmem:[%s469 + $0x24] sm:$0xf]
        %v480 = vld [vmem:[%s469 + $0x28] sm:$0xf]
        %v481 = vld [vmem:[%s469 + $0x2c] sm:$0xf]
        %v482 = vld [vmem:[%s469 + $0x30] sm:$0xf]
        %v483 = vld [vmem:[%s469 + $0x34] sm:$0xf]
        %v484 = vld [vmem:[%s469 + $0x38] sm:$0xf]
        %v485 = vld [vmem:[%s469 + $0x3c] sm:$0xf]
        %s486 = scalar_lea.vmem [#allocation7], 1
        %v487 = vld [vmem:[%s486] sm:$0x1]
        %v489 = vlaneseq
        %v490 = vshrl.u32 %v489, 7
        %v491 = vsub.s32 0, %v490
        %v492 = vrot.slane %v487, %v491
        %v510 = vunpack.c.l.b16 %v470
        %v511 = vunpack.c.l.b16 %v471
        %v512 = vunpack.c.l.b16 %v472
        %v513 = vunpack.c.l.b16 %v473
        %v514 = vunpack.c.l.b16 %v474
        %v515 = vunpack.c.l.b16 %v475
        %v516 = vunpack.c.l.b16 %v476
        %v517 = vunpack.c.l.b16 %v477
        %v518 = vunpack.c.l.b16 %v478
        %v519 = vunpack.c.l.b16 %v479
        %v520 = vunpack.c.l.b16 %v480
        %v521 = vunpack.c.l.b16 %v481
        %v522 = vunpack.c.l.b16 %v482
        %v523 = vunpack.c.l.b16 %v483
        %v524 = vunpack.c.l.b16 %v484
        %v525 = vunpack.c.l.b16 %v485
        %v526 = vpack.c.b16 %v511, %v510
        %v527 = vpack.c.b16 %v513, %v512
        %v528 = vpack.c.b16 %v515, %v514
        %v529 = vpack.c.b16 %v517, %v516
        %v530 = vpack.c.b16 %v519, %v518
        %v531 = vpack.c.b16 %v521, %v520
        %v532 = vpack.c.b16 %v523, %v522
        %v533 = vpack.c.b16 %v525, %v524
        %542 = vmatprep.subr.bf16.mxu0 0
        %543 = vmatpush1.bf16.msra.mxu0 %v526
        %544 = vmatprep.subr.bf16.mxu0 0
        %545 = vmatpush1.bf16.msra.mxu0 %v527
        %546 = vmatprep.subr.bf16.mxu0 0
        %547 = vmatpush1.bf16.msra.mxu0 %v528
        %548 = vmatprep.subr.bf16.mxu0 0
        %549 = vmatpush1.bf16.msra.mxu0 %v529
        %550 = vmatprep.subr.bf16.mxu0 0
        %551 = vmatpush1.bf16.msra.mxu0 %v530
        %552 = vmatprep.subr.bf16.mxu0 0
        %553 = vmatpush1.bf16.msra.mxu0 %v531
        %554 = vmatprep.subr.bf16.mxu0 0
        %555 = vmatpush1.bf16.msra.mxu0 %v532
        %556 = vmatprep.subr.bf16.mxu0 0
        %557 = vmatpush1.bf16.msra.mxu0 %v533
        %558 = vmatprep.subr.bf16.mxu0 0
        %559 = vmatpush1.bf16.msra.mxu0 0
        %560 = vmatprep.subr.bf16.mxu0 0
        %561 = vmatpush1.bf16.msra.mxu0 0
        %562 = vmatprep.subr.bf16.mxu0 0
        %563 = vmatpush1.bf16.msra.mxu0 0
        %564 = vmatprep.subr.bf16.mxu0 0
        %565 = vmatpush1.bf16.msra.mxu0 0
        %566 = vmatprep.subr.bf16.mxu0 0
        %567 = vmatpush1.bf16.msra.mxu0 0
        %568 = vmatprep.subr.bf16.mxu0 0
        %569 = vmatpush1.bf16.msra.mxu0 0
        %570 = vmatprep.subr.bf16.mxu0 0
        %571 = vmatpush1.bf16.msra.mxu0 0
        %572 = vmatprep.subr.bf16.mxu0 0
        %573 = vmatpush1.bf16.msra.mxu0 0
        %574 = vmatprep.mubr.bf16.mxu0 0
        %575 = vmatmul.mubr.bf16.gmra.mrb[0].mxu0 %v461
        %v576 = vpop.f32.mrb[0].mxu0
        %v577 = vadd.f32 %v492, %v576
        %v578 = vpop.f32.mrb[0].mxu0
        %v579 = vpop.f32.mrb[0].mxu0
        %v580 = vadd.f32 %v492, %v579
        %v581 = vpop.f32.mrb[0].mxu0
        %582 = vmatprep.mubr.bf16.mxu0 0
        %583 = vmatmul.mubr.bf16.gmra.mrb[0].mxu0 %v462
        %v584 = vpop.f32.mrb[0].mxu0
        %v585 = vadd.f32 %v492, %v584
        %v586 = vpop.f32.mrb[0].mxu0
        %v587 = vpop.f32.mrb[0].mxu0
        %v588 = vadd.f32 %v492, %v587
        %v589 = vpop.f32.mrb[0].mxu0
        %590 = vmatprep.mubr.bf16.mxu0 0
        %591 = vmatmul.mubr.bf16.gmra.mrb[0].mxu0 %v463
        %v592 = vpop.f32.mrb[0].mxu0
        %v593 = vadd.f32 %v492, %v592
        %v594 = vpop.f32.mrb[0].mxu0
        %v595 = vpop.f32.mrb[0].mxu0
        %v596 = vadd.f32 %v492, %v595
        %v597 = vpop.f32.mrb[0].mxu0
        %598 = vmatprep.mubr.bf16.mxu0 0
        %599 = vmatmul.mubr.bf16.gmra.mrb[0].mxu0 %v464
        %v600 = vpop.f32.mrb[0].mxu0
        %v601 = vadd.f32 %v492, %v600
        %v602 = vpop.f32.mrb[0].mxu0
        %v603 = vpop.f32.mrb[0].mxu0
        %v604 = vadd.f32 %v492, %v603
        %v605 = vpop.f32.mrb[0].mxu0
        %606 = vmatprep.mubr.bf16.mxu0 0
        %607 = vmatmul.mubr.bf16.gmra.mrb[0].mxu0 %v465
        %v608 = vpop.f32.mrb[0].mxu0
        %v609 = vadd.f32 %v492, %v608
        %v610 = vpop.f32.mrb[0].mxu0
        %v611 = vpop.f32.mrb[0].mxu0
        %v612 = vadd.f32 %v492, %v611
        %v613 = vpop.f32.mrb[0].mxu0
        %614 = vmatprep.mubr.bf16.mxu0 0
        %615 = vmatmul.mubr.bf16.gmra.mrb[0].mxu0 %v466
        %v616 = vpop.f32.mrb[0].mxu0
        %v617 = vadd.f32 %v492, %v616
        %v618 = vpop.f32.mrb[0].mxu0
        %v619 = vpop.f32.mrb[0].mxu0
        %v620 = vadd.f32 %v492, %v619
        %v621 = vpop.f32.mrb[0].mxu0
        %622 = vmatprep.mubr.bf16.mxu0 0
        %623 = vmatmul.mubr.bf16.gmra.mrb[0].mxu0 %v467
        %v624 = vpop.f32.mrb[0].mxu0
        %v625 = vadd.f32 %v492, %v624
        %v626 = vpop.f32.mrb[0].mxu0
        %v627 = vpop.f32.mrb[0].mxu0
        %v628 = vadd.f32 %v492, %v627
        %v629 = vpop.f32.mrb[0].mxu0
        %630 = vmatprep.mubr.bf16.mxu0 0
        %631 = vmatmul.mubr.bf16.gmra.mrb[0].mxu0 %v468
        %v632 = vpop.f32.mrb[0].mxu0
        %v633 = vadd.f32 %v492, %v632
        %v634 = vpop.f32.mrb[0].mxu0
        %v635 = vpop.f32.mrb[0].mxu0
        %v636 = vadd.f32 %v492, %v635
        %v637 = vpop.f32.mrb[0].mxu0
        %638 = vdwg.mxu0
        %vm639 = vcmp.ge.f32.partialorder %v577, 0.0
        %vm640 = vcmp.ge.f32.partialorder %v580, 0.0
        %vm641 = vcmp.ge.f32.partialorder %v585, 0.0
        %vm642 = vcmp.ge.f32.partialorder %v588, 0.0
        %vm643 = vcmp.ge.f32.partialorder %v593, 0.0
        %vm644 = vcmp.ge.f32.partialorder %v596, 0.0
        %vm645 = vcmp.ge.f32.partialorder %v601, 0.0
        %vm646 = vcmp.ge.f32.partialorder %v604, 0.0
        %vm647 = vcmp.ge.f32.partialorder %v609, 0.0
        %vm648 = vcmp.ge.f32.partialorder %v612, 0.0
        %vm649 = vcmp.ge.f32.partialorder %v617, 0.0
        %vm650 = vcmp.ge.f32.partialorder %v620, 0.0
        %vm651 = vcmp.ge.f32.partialorder %v625, 0.0
        %vm652 = vcmp.ge.f32.partialorder %v628, 0.0
        %vm653 = vcmp.ge.f32.partialorder %v633, 0.0
        %vm654 = vcmp.ge.f32.partialorder %v636, 0.0
        %v655 = vmul.f32 %v577, 0.2
        %v656 = vmul.f32 %v580, 0.2
        %v657 = vmul.f32 %v585, 0.2
        %v658 = vmul.f32 %v588, 0.2
        %v659 = vmul.f32 %v593, 0.2
        %v660 = vmul.f32 %v596, 0.2
        %v661 = vmul.f32 %v601, 0.2
        %v662 = vmul.f32 %v604, 0.2
        %v663 = vmul.f32 %v609, 0.2
        %v664 = vmul.f32 %v612, 0.2
        %v665 = vmul.f32 %v617, 0.2
        %v666 = vmul.f32 %v620, 0.2
        %v667 = vmul.f32 %v625, 0.2
        %v668 = vmul.f32 %v628, 0.2
        %v669 = vmul.f32 %v633, 0.2
        %v670 = vmul.f32 %v636, 0.2
        %v671 = vsel %vm639, %v577, %v655
        %v672 = vsel %vm640, %v580, %v656
        %v673 = vsel %vm641, %v585, %v657
        %v674 = vsel %vm642, %v588, %v658
        %v675 = vsel %vm643, %v593, %v659
        %v676 = vsel %vm644, %v596, %v660
        %v677 = vsel %vm645, %v601, %v661
        %v678 = vsel %vm646, %v604, %v662
        %v679 = vsel %vm647, %v609, %v663
        %v680 = vsel %vm648, %v612, %v664
        %v681 = vsel %vm649, %v617, %v665
        %v682 = vsel %vm650, %v620, %v666
        %v683 = vsel %vm651, %v625, %v667
        %v684 = vsel %vm652, %v628, %v668
        %v685 = vsel %vm653, %v633, %v669
        %v686 = vsel %vm654, %v636, %v670
        %v687 = vpack.c.bf16 %v672, %v671
        %v688 = vpack.c.bf16 %v674, %v673
        %v689 = vpack.c.bf16 %v676, %v675
        %v690 = vpack.c.bf16 %v678, %v677
        %v691 = vpack.c.bf16 %v680, %v679
        %v692 = vpack.c.bf16 %v682, %v681
        %v693 = vpack.c.bf16 %v684, %v683
        %v694 = vpack.c.bf16 %v686, %v685
        %s695 = scalar_lea.vmem [#allocation5], 128
        %v696 = vld [vmem:[%s695] sm:$0xf]
        %v697 = vld [vmem:[%s695 + $0x4] sm:$0xf]
        %v698 = vld [vmem:[%s695 + $0x8] sm:$0xf]
        %v699 = vld [vmem:[%s695 + $0xc] sm:$0xf]
        %v700 = vld [vmem:[%s695 + $0x10] sm:$0xf]
        %v701 = vld [vmem:[%s695 + $0x14] sm:$0xf]
        %v702 = vld [vmem:[%s695 + $0x18] sm:$0xf]
        %v703 = vld [vmem:[%s695 + $0x1c] sm:$0xf]
        %v704 = vld [vmem:[%s695 + $0x20] sm:$0xf]
        %v705 = vld [vmem:[%s695 + $0x24] sm:$0xf]
        %v706 = vld [vmem:[%s695 + $0x28] sm:$0xf]
        %v707 = vld [vmem:[%s695 + $0x2c] sm:$0xf]
        %v708 = vld [vmem:[%s695 + $0x30] sm:$0xf]
        %v709 = vld [vmem:[%s695 + $0x34] sm:$0xf]
        %v710 = vld [vmem:[%s695 + $0x38] sm:$0xf]
        %v711 = vld [vmem:[%s695 + $0x3c] sm:$0xf]
        %s712 = scalar_lea.vmem [#allocation7], 2
        %v713 = vld [vmem:[%s712] sm:$0x1]
        %v715 = vlaneseq
        %v716 = vshrl.u32 %v715, 7
        %v717 = vsub.s32 0, %v716
        %v718 = vrot.slane %v713, %v717
        %v736 = vunpack.c.l.b16 %v696
        %v737 = vunpack.c.l.b16 %v697
        %v738 = vunpack.c.l.b16 %v698
        %v739 = vunpack.c.l.b16 %v699
        %v740 = vunpack.c.l.b16 %v700
        %v741 = vunpack.c.l.b16 %v701
        %v742 = vunpack.c.l.b16 %v702
        %v743 = vunpack.c.l.b16 %v703
        %v744 = vunpack.c.l.b16 %v704
        %v745 = vunpack.c.l.b16 %v705
        %v746 = vunpack.c.l.b16 %v706
        %v747 = vunpack.c.l.b16 %v707
        %v748 = vunpack.c.l.b16 %v708
        %v749 = vunpack.c.l.b16 %v709
        %v750 = vunpack.c.l.b16 %v710
        %v751 = vunpack.c.l.b16 %v711
        %v752 = vpack.c.b16 %v737, %v736
        %v753 = vpack.c.b16 %v739, %v738
        %v754 = vpack.c.b16 %v741, %v740
        %v755 = vpack.c.b16 %v743, %v742
        %v756 = vpack.c.b16 %v745, %v744
        %v757 = vpack.c.b16 %v747, %v746
        %v758 = vpack.c.b16 %v749, %v748
        %v759 = vpack.c.b16 %v751, %v750
        %768 = vmatprep.subr.bf16.mxu0 0
        %769 = vmatpush1.bf16.msra.mxu0 %v752
        %770 = vmatprep.subr.bf16.mxu0 0
        %771 = vmatpush1.bf16.msra.mxu0 %v753
        %772 = vmatprep.subr.bf16.mxu0 0
        %773 = vmatpush1.bf16.msra.mxu0 %v754
        %774 = vmatprep.subr.bf16.mxu0 0
        %775 = vmatpush1.bf16.msra.mxu0 %v755
        %776 = vmatprep.subr.bf16.mxu0 0
        %777 = vmatpush1.bf16.msra.mxu0 %v756
        %778 = vmatprep.subr.bf16.mxu0 0
        %779 = vmatpush1.bf16.msra.mxu0 %v757
        %780 = vmatprep.subr.bf16.mxu0 0
        %781 = vmatpush1.bf16.msra.mxu0 %v758
        %782 = vmatprep.subr.bf16.mxu0 0
        %783 = vmatpush1.bf16.msra.mxu0 %v759
        %784 = vmatprep.subr.bf16.mxu0 0
        %785 = vmatpush1.bf16.msra.mxu0 0
        %786 = vmatprep.subr.bf16.mxu0 0
        %787 = vmatpush1.bf16.msra.mxu0 0
        %788 = vmatprep.subr.bf16.mxu0 0
        %789 = vmatpush1.bf16.msra.mxu0 0
        %790 = vmatprep.subr.bf16.mxu0 0
        %791 = vmatpush1.bf16.msra.mxu0 0
        %792 = vmatprep.subr.bf16.mxu0 0
        %793 = vmatpush1.bf16.msra.mxu0 0
        %794 = vmatprep.subr.bf16.mxu0 0
        %795 = vmatpush1.bf16.msra.mxu0 0
        %796 = vmatprep.subr.bf16.mxu0 0
        %797 = vmatpush1.bf16.msra.mxu0 0
        %798 = vmatprep.subr.bf16.mxu0 0
        %799 = vmatpush1.bf16.msra.mxu0 0
        %800 = vmatprep.mubr.bf16.mxu0 0
        %801 = vmatmul.mubr.bf16.gmra.mrb[0].mxu0 %v687
        %v802 = vpop.f32.mrb[0].mxu0
        %v803 = vadd.f32 %v718, %v802
        %v804 = vpop.f32.mrb[0].mxu0
        %v805 = vpop.f32.mrb[0].mxu0
        %v806 = vadd.f32 %v718, %v805
        %v807 = vpop.f32.mrb[0].mxu0
        %808 = vmatprep.mubr.bf16.mxu0 0
        %809 = vmatmul.mubr.bf16.gmra.mrb[0].mxu0 %v688
        %v810 = vpop.f32.mrb[0].mxu0
        %v811 = vadd.f32 %v718, %v810
        %v812 = vpop.f32.mrb[0].mxu0
        %v813 = vpop.f32.mrb[0].mxu0
        %v814 = vadd.f32 %v718, %v813
        %v815 = vpop.f32.mrb[0].mxu0
        %816 = vmatprep.mubr.bf16.mxu0 0
        %817 = vmatmul.mubr.bf16.gmra.mrb[0].mxu0 %v689
        %v818 = vpop.f32.mrb[0].mxu0
        %v819 = vadd.f32 %v718, %v818
        %v820 = vpop.f32.mrb[0].mxu0
        %v821 = vpop.f32.mrb[0].mxu0
        %v822 = vadd.f32 %v718, %v821
        %v823 = vpop.f32.mrb[0].mxu0
        %824 = vmatprep.mubr.bf16.mxu0 0
        %825 = vmatmul.mubr.bf16.gmra.mrb[0].mxu0 %v690
        %v826 = vpop.f32.mrb[0].mxu0
        %v827 = vadd.f32 %v718, %v826
        %v828 = vpop.f32.mrb[0].mxu0
        %v829 = vpop.f32.mrb[0].mxu0
        %v830 = vadd.f32 %v718, %v829
        %v831 = vpop.f32.mrb[0].mxu0
        %832 = vmatprep.mubr.bf16.mxu0 0
        %833 = vmatmul.mubr.bf16.gmra.mrb[0].mxu0 %v691
        %v834 = vpop.f32.mrb[0].mxu0
        %v835 = vadd.f32 %v718, %v834
        %v836 = vpop.f32.mrb[0].mxu0
        %v837 = vpop.f32.mrb[0].mxu0
        %v838 = vadd.f32 %v718, %v837
        %v839 = vpop.f32.mrb[0].mxu0
        %840 = vmatprep.mubr.bf16.mxu0 0
        %841 = vmatmul.mubr.bf16.gmra.mrb[0].mxu0 %v692
        %v842 = vpop.f32.mrb[0].mxu0
        %v843 = vadd.f32 %v718, %v842
        %v844 = vpop.f32.mrb[0].mxu0
        %v845 = vpop.f32.mrb[0].mxu0
        %v846 = vadd.f32 %v718, %v845
        %v847 = vpop.f32.mrb[0].mxu0
        %848 = vmatprep.mubr.bf16.mxu0 0
        %849 = vmatmul.mubr.bf16.gmra.mrb[0].mxu0 %v693
        %v850 = vpop.f32.mrb[0].mxu0
        %v851 = vadd.f32 %v718, %v850
        %v852 = vpop.f32.mrb[0].mxu0
        %v853 = vpop.f32.mrb[0].mxu0
        %v854 = vadd.f32 %v718, %v853
        %v855 = vpop.f32.mrb[0].mxu0
        %856 = vmatprep.mubr.bf16.mxu0 0
        %857 = vmatmul.mubr.bf16.gmra.mrb[0].mxu0 %v694
        %v858 = vpop.f32.mrb[0].mxu0
        %v859 = vadd.f32 %v718, %v858
        %v860 = vpop.f32.mrb[0].mxu0
        %v861 = vpop.f32.mrb[0].mxu0
        %v862 = vadd.f32 %v718, %v861
        %v863 = vpop.f32.mrb[0].mxu0
        %864 = vdwg.mxu0
        %vm865 = vcmp.ge.f32.partialorder %v803, 0.0
        %vm866 = vcmp.ge.f32.partialorder %v806, 0.0
        %vm867 = vcmp.ge.f32.partialorder %v811, 0.0
        %vm868 = vcmp.ge.f32.partialorder %v814, 0.0
        %vm869 = vcmp.ge.f32.partialorder %v819, 0.0
        %vm870 = vcmp.ge.f32.partialorder %v822, 0.0
        %vm871 = vcmp.ge.f32.partialorder %v827, 0.0
        %vm872 = vcmp.ge.f32.partialorder %v830, 0.0
        %vm873 = vcmp.ge.f32.partialorder %v835, 0.0
        %vm874 = vcmp.ge.f32.partialorder %v838, 0.0
        %vm875 = vcmp.ge.f32.partialorder %v843, 0.0
        %vm876 = vcmp.ge.f32.partialorder %v846, 0.0
        %vm877 = vcmp.ge.f32.partialorder %v851, 0.0
        %vm878 = vcmp.ge.f32.partialorder %v854, 0.0
        %vm879 = vcmp.ge.f32.partialorder %v859, 0.0
        %vm880 = vcmp.ge.f32.partialorder %v862, 0.0
        %v881 = vmul.f32 %v803, 0.2
        %v882 = vmul.f32 %v806, 0.2
        %v883 = vmul.f32 %v811, 0.2
        %v884 = vmul.f32 %v814, 0.2
        %v885 = vmul.f32 %v819, 0.2
        %v886 = vmul.f32 %v822, 0.2
        %v887 = vmul.f32 %v827, 0.2
        %v888 = vmul.f32 %v830, 0.2
        %v889 = vmul.f32 %v835, 0.2
        %v890 = vmul.f32 %v838, 0.2
        %v891 = vmul.f32 %v843, 0.2
        %v892 = vmul.f32 %v846, 0.2
        %v893 = vmul.f32 %v851, 0.2
        %v894 = vmul.f32 %v854, 0.2
        %v895 = vmul.f32 %v859, 0.2
        %v896 = vmul.f32 %v862, 0.2
        %v897 = vsel %vm865, %v803, %v881
        %v898 = vsel %vm866, %v806, %v882
        %v899 = vsel %vm867, %v811, %v883
        %v900 = vsel %vm868, %v814, %v884
        %v901 = vsel %vm869, %v819, %v885
        %v902 = vsel %vm870, %v822, %v886
        %v903 = vsel %vm871, %v827, %v887
        %v904 = vsel %vm872, %v830, %v888
        %v905 = vsel %vm873, %v835, %v889
        %v906 = vsel %vm874, %v838, %v890
        %v907 = vsel %vm875, %v843, %v891
        %v908 = vsel %vm876, %v846, %v892
        %v909 = vsel %vm877, %v851, %v893
        %v910 = vsel %vm878, %v854, %v894
        %v911 = vsel %vm879, %v859, %v895
        %v912 = vsel %vm880, %v862, %v896
        %v913 = vpack.c.bf16 %v898, %v897
        %v914 = vpack.c.bf16 %v900, %v899
        %v915 = vpack.c.bf16 %v902, %v901
        %v916 = vpack.c.bf16 %v904, %v903
        %v917 = vpack.c.bf16 %v906, %v905
        %v918 = vpack.c.bf16 %v908, %v907
        %v919 = vpack.c.bf16 %v910, %v909
        %v920 = vpack.c.bf16 %v912, %v911
        %s921 = scalar_lea.vmem [#allocation5], 192
        %v922 = vld [vmem:[%s921] sm:$0xf]
        %v923 = vld [vmem:[%s921 + $0x4] sm:$0xf]
        %v924 = vld [vmem:[%s921 + $0x8] sm:$0xf]
        %v925 = vld [vmem:[%s921 + $0xc] sm:$0xf]
        %v926 = vld [vmem:[%s921 + $0x10] sm:$0xf]
        %v927 = vld [vmem:[%s921 + $0x14] sm:$0xf]
        %v928 = vld [vmem:[%s921 + $0x18] sm:$0xf]
        %v929 = vld [vmem:[%s921 + $0x1c] sm:$0xf]
        %v930 = vld [vmem:[%s921 + $0x20] sm:$0xf]
        %v931 = vld [vmem:[%s921 + $0x24] sm:$0xf]
        %v932 = vld [vmem:[%s921 + $0x28] sm:$0xf]
        %v933 = vld [vmem:[%s921 + $0x2c] sm:$0xf]
        %v934 = vld [vmem:[%s921 + $0x30] sm:$0xf]
        %v935 = vld [vmem:[%s921 + $0x34] sm:$0xf]
        %v936 = vld [vmem:[%s921 + $0x38] sm:$0xf]
        %v937 = vld [vmem:[%s921 + $0x3c] sm:$0xf]
        %s938 = scalar_lea.vmem [#allocation7], 3
        %v939 = vld [vmem:[%s938] sm:$0x1]
        %v941 = vlaneseq
        %v942 = vshrl.u32 %v941, 7
        %v943 = vsub.s32 0, %v942
        %v944 = vrot.slane %v939, %v943
        %v962 = vunpack.c.l.b16 %v922
        %v963 = vunpack.c.l.b16 %v923
        %v964 = vunpack.c.l.b16 %v924
        %v965 = vunpack.c.l.b16 %v925
        %v966 = vunpack.c.l.b16 %v926
        %v967 = vunpack.c.l.b16 %v927
        %v968 = vunpack.c.l.b16 %v928
        %v969 = vunpack.c.l.b16 %v929
        %v970 = vunpack.c.l.b16 %v930
        %v971 = vunpack.c.l.b16 %v931
        %v972 = vunpack.c.l.b16 %v932
        %v973 = vunpack.c.l.b16 %v933
        %v974 = vunpack.c.l.b16 %v934
        %v975 = vunpack.c.l.b16 %v935
        %v976 = vunpack.c.l.b16 %v936
        %v977 = vunpack.c.l.b16 %v937
        %v978 = vpack.c.b16 %v963, %v962
        %v979 = vpack.c.b16 %v965, %v964
        %v980 = vpack.c.b16 %v967, %v966
        %v981 = vpack.c.b16 %v969, %v968
        %v982 = vpack.c.b16 %v971, %v970
        %v983 = vpack.c.b16 %v973, %v972
        %v984 = vpack.c.b16 %v975, %v974
        %v985 = vpack.c.b16 %v977, %v976
        %994 = vmatprep.subr.bf16.mxu0 0
        %995 = vmatpush1.bf16.msra.mxu0 %v978
        %996 = vmatprep.subr.bf16.mxu0 0
        %997 = vmatpush1.bf16.msra.mxu0 %v979
        %998 = vmatprep.subr.bf16.mxu0 0
        %999 = vmatpush1.bf16.msra.mxu0 %v980
        %1000 = vmatprep.subr.bf16.mxu0 0
        %1001 = vmatpush1.bf16.msra.mxu0 %v981
        %1002 = vmatprep.subr.bf16.mxu0 0
        %1003 = vmatpush1.bf16.msra.mxu0 %v982
        %1004 = vmatprep.subr.bf16.mxu0 0
        %1005 = vmatpush1.bf16.msra.mxu0 %v983
        %1006 = vmatprep.subr.bf16.mxu0 0
        %1007 = vmatpush1.bf16.msra.mxu0 %v984
        %1008 = vmatprep.subr.bf16.mxu0 0
        %1009 = vmatpush1.bf16.msra.mxu0 %v985
        %1010 = vmatprep.subr.bf16.mxu0 0
        %1011 = vmatpush1.bf16.msra.mxu0 0
        %1012 = vmatprep.subr.bf16.mxu0 0
        %1013 = vmatpush1.bf16.msra.mxu0 0
        %1014 = vmatprep.subr.bf16.mxu0 0
        %1015 = vmatpush1.bf16.msra.mxu0 0
        %1016 = vmatprep.subr.bf16.mxu0 0
        %1017 = vmatpush1.bf16.msra.mxu0 0
        %1018 = vmatprep.subr.bf16.mxu0 0
        %1019 = vmatpush1.bf16.msra.mxu0 0
        %1020 = vmatprep.subr.bf16.mxu0 0
        %1021 = vmatpush1.bf16.msra.mxu0 0
        %1022 = vmatprep.subr.bf16.mxu0 0
        %1023 = vmatpush1.bf16.msra.mxu0 0
        %1024 = vmatprep.subr.bf16.mxu0 0
        %1025 = vmatpush1.bf16.msra.mxu0 0
        %1026 = vmatprep.mubr.bf16.mxu0 0
        %1027 = vmatmul.mubr.bf16.gmra.mrb[0].mxu0 %v913
        %v1028 = vpop.f32.mrb[0].mxu0
        %v1029 = vadd.f32 %v944, %v1028
        %v1030 = vpop.f32.mrb[0].mxu0
        %v1031 = vpop.f32.mrb[0].mxu0
        %v1032 = vadd.f32 %v944, %v1031
        %v1033 = vpop.f32.mrb[0].mxu0
        %1034 = vmatprep.mubr.bf16.mxu0 0
        %1035 = vmatmul.mubr.bf16.gmra.mrb[0].mxu0 %v914
        %v1036 = vpop.f32.mrb[0].mxu0
        %v1037 = vadd.f32 %v944, %v1036
        %v1038 = vpop.f32.mrb[0].mxu0
        %v1039 = vpop.f32.mrb[0].mxu0
        %v1040 = vadd.f32 %v944, %v1039
        %v1041 = vpop.f32.mrb[0].mxu0
        %1042 = vmatprep.mubr.bf16.mxu0 0
        %1043 = vmatmul.mubr.bf16.gmra.mrb[0].mxu0 %v915
        %v1044 = vpop.f32.mrb[0].mxu0
        %v1045 = vadd.f32 %v944, %v1044
        %v1046 = vpop.f32.mrb[0].mxu0
        %v1047 = vpop.f32.mrb[0].mxu0
        %v1048 = vadd.f32 %v944, %v1047
        %v1049 = vpop.f32.mrb[0].mxu0
        %1050 = vmatprep.mubr.bf16.mxu0 0
        %1051 = vmatmul.mubr.bf16.gmra.mrb[0].mxu0 %v916
        %v1052 = vpop.f32.mrb[0].mxu0
        %v1053 = vadd.f32 %v944, %v1052
        %v1054 = vpop.f32.mrb[0].mxu0
        %v1055 = vpop.f32.mrb[0].mxu0
        %v1056 = vadd.f32 %v944, %v1055
        %v1057 = vpop.f32.mrb[0].mxu0
        %1058 = vmatprep.mubr.bf16.mxu0 0
        %1059 = vmatmul.mubr.bf16.gmra.mrb[0].mxu0 %v917
        %v1060 = vpop.f32.mrb[0].mxu0
        %v1061 = vadd.f32 %v944, %v1060
        %v1062 = vpop.f32.mrb[0].mxu0
        %v1063 = vpop.f32.mrb[0].mxu0
        %v1064 = vadd.f32 %v944, %v1063
        %v1065 = vpop.f32.mrb[0].mxu0
        %1066 = vmatprep.mubr.bf16.mxu0 0
        %1067 = vmatmul.mubr.bf16.gmra.mrb[0].mxu0 %v918
        %v1068 = vpop.f32.mrb[0].mxu0
        %v1069 = vadd.f32 %v944, %v1068
        %v1070 = vpop.f32.mrb[0].mxu0
        %v1071 = vpop.f32.mrb[0].mxu0
        %v1072 = vadd.f32 %v944, %v1071
        %v1073 = vpop.f32.mrb[0].mxu0
        %1074 = vmatprep.mubr.bf16.mxu0 0
        %1075 = vmatmul.mubr.bf16.gmra.mrb[0].mxu0 %v919
        %v1076 = vpop.f32.mrb[0].mxu0
        %v1077 = vadd.f32 %v944, %v1076
        %v1078 = vpop.f32.mrb[0].mxu0
        %v1079 = vpop.f32.mrb[0].mxu0
        %v1080 = vadd.f32 %v944, %v1079
        %v1081 = vpop.f32.mrb[0].mxu0
        %1082 = vmatprep.mubr.bf16.mxu0 0
        %1083 = vmatmul.mubr.bf16.gmra.mrb[0].mxu0 %v920
        %v1084 = vpop.f32.mrb[0].mxu0
        %v1085 = vadd.f32 %v944, %v1084
        %v1086 = vpop.f32.mrb[0].mxu0
        %v1087 = vpop.f32.mrb[0].mxu0
        %v1088 = vadd.f32 %v944, %v1087
        %v1089 = vpop.f32.mrb[0].mxu0
        %1090 = vdwg.mxu0
        %vm1091 = vcmp.ge.f32.partialorder %v1029, 0.0
        %vm1092 = vcmp.ge.f32.partialorder %v1032, 0.0
        %vm1093 = vcmp.ge.f32.partialorder %v1037, 0.0
        %vm1094 = vcmp.ge.f32.partialorder %v1040, 0.0
        %vm1095 = vcmp.ge.f32.partialorder %v1045, 0.0
        %vm1096 = vcmp.ge.f32.partialorder %v1048, 0.0
        %vm1097 = vcmp.ge.f32.partialorder %v1053, 0.0
        %vm1098 = vcmp.ge.f32.partialorder %v1056, 0.0
        %vm1099 = vcmp.ge.f32.partialorder %v1061, 0.0
        %vm1100 = vcmp.ge.f32.partialorder %v1064, 0.0
        %vm1101 = vcmp.ge.f32.partialorder %v1069, 0.0
        %vm1102 = vcmp.ge.f32.partialorder %v1072, 0.0
        %vm1103 = vcmp.ge.f32.partialorder %v1077, 0.0
        %vm1104 = vcmp.ge.f32.partialorder %v1080, 0.0
        %vm1105 = vcmp.ge.f32.partialorder %v1085, 0.0
        %vm1106 = vcmp.ge.f32.partialorder %v1088, 0.0
        %v1107 = vmul.f32 %v1029, 0.2
        %v1108 = vmul.f32 %v1032, 0.2
        %v1109 = vmul.f32 %v1037, 0.2
        %v1110 = vmul.f32 %v1040, 0.2
        %v1111 = vmul.f32 %v1045, 0.2
        %v1112 = vmul.f32 %v1048, 0.2
        %v1113 = vmul.f32 %v1053, 0.2
        %v1114 = vmul.f32 %v1056, 0.2
        %v1115 = vmul.f32 %v1061, 0.2
        %v1116 = vmul.f32 %v1064, 0.2
        %v1117 = vmul.f32 %v1069, 0.2
        %v1118 = vmul.f32 %v1072, 0.2
        %v1119 = vmul.f32 %v1077, 0.2
        %v1120 = vmul.f32 %v1080, 0.2
        %v1121 = vmul.f32 %v1085, 0.2
        %v1122 = vmul.f32 %v1088, 0.2
        %v1123 = vsel %vm1091, %v1029, %v1107
        %v1124 = vsel %vm1092, %v1032, %v1108
        %v1125 = vsel %vm1093, %v1037, %v1109
        %v1126 = vsel %vm1094, %v1040, %v1110
        %v1127 = vsel %vm1095, %v1045, %v1111
        %v1128 = vsel %vm1096, %v1048, %v1112
        %v1129 = vsel %vm1097, %v1053, %v1113
        %v1130 = vsel %vm1098, %v1056, %v1114
        %v1131 = vsel %vm1099, %v1061, %v1115
        %v1132 = vsel %vm1100, %v1064, %v1116
        %v1133 = vsel %vm1101, %v1069, %v1117
        %v1134 = vsel %vm1102, %v1072, %v1118
        %v1135 = vsel %vm1103, %v1077, %v1119
        %v1136 = vsel %vm1104, %v1080, %v1120
        %v1137 = vsel %vm1105, %v1085, %v1121
        %v1138 = vsel %vm1106, %v1088, %v1122
        %v1139 = vpack.c.bf16 %v1124, %v1123
        %v1140 = vpack.c.bf16 %v1126, %v1125
        %v1141 = vpack.c.bf16 %v1128, %v1127
        %v1142 = vpack.c.bf16 %v1130, %v1129
        %v1143 = vpack.c.bf16 %v1132, %v1131
        %v1144 = vpack.c.bf16 %v1134, %v1133
        %v1145 = vpack.c.bf16 %v1136, %v1135
        %v1146 = vpack.c.bf16 %v1138, %v1137
        %s1147 = scalar_lea.vmem [#allocation5], 256
        %v1148 = vld [vmem:[%s1147] sm:$0xf]
        %v1149 = vld [vmem:[%s1147 + $0x4] sm:$0xf]
        %v1150 = vld [vmem:[%s1147 + $0x8] sm:$0xf]
        %v1151 = vld [vmem:[%s1147 + $0xc] sm:$0xf]
        %v1152 = vld [vmem:[%s1147 + $0x10] sm:$0xf]
        %v1153 = vld [vmem:[%s1147 + $0x14] sm:$0xf]
        %v1154 = vld [vmem:[%s1147 + $0x18] sm:$0xf]
        %v1155 = vld [vmem:[%s1147 + $0x1c] sm:$0xf]
        %v1156 = vld [vmem:[%s1147 + $0x20] sm:$0xf]
        %v1157 = vld [vmem:[%s1147 + $0x24] sm:$0xf]
        %v1158 = vld [vmem:[%s1147 + $0x28] sm:$0xf]
        %v1159 = vld [vmem:[%s1147 + $0x2c] sm:$0xf]
        %v1160 = vld [vmem:[%s1147 + $0x30] sm:$0xf]
        %v1161 = vld [vmem:[%s1147 + $0x34] sm:$0xf]
        %v1162 = vld [vmem:[%s1147 + $0x38] sm:$0xf]
        %v1163 = vld [vmem:[%s1147 + $0x3c] sm:$0xf]
        %s1164 = scalar_lea.vmem [#allocation7], 4
        %v1165 = vld [vmem:[%s1164] sm:$0x1]
        %v1167 = vlaneseq
        %v1168 = vshrl.u32 %v1167, 7
        %v1169 = vsub.s32 0, %v1168
        %v1170 = vrot.slane %v1165, %v1169
        %v1188 = vunpack.c.l.b16 %v1148
        %v1189 = vunpack.c.l.b16 %v1149
        %v1190 = vunpack.c.l.b16 %v1150
        %v1191 = vunpack.c.l.b16 %v1151
        %v1192 = vunpack.c.l.b16 %v1152
        %v1193 = vunpack.c.l.b16 %v1153
        %v1194 = vunpack.c.l.b16 %v1154
        %v1195 = vunpack.c.l.b16 %v1155
        %v1196 = vunpack.c.l.b16 %v1156
        %v1197 = vunpack.c.l.b16 %v1157
        %v1198 = vunpack.c.l.b16 %v1158
        %v1199 = vunpack.c.l.b16 %v1159
        %v1200 = vunpack.c.l.b16 %v1160
        %v1201 = vunpack.c.l.b16 %v1161
        %v1202 = vunpack.c.l.b16 %v1162
        %v1203 = vunpack.c.l.b16 %v1163
        %v1204 = vpack.c.b16 %v1189, %v1188
        %v1205 = vpack.c.b16 %v1191, %v1190
        %v1206 = vpack.c.b16 %v1193, %v1192
        %v1207 = vpack.c.b16 %v1195, %v1194
        %v1208 = vpack.c.b16 %v1197, %v1196
        %v1209 = vpack.c.b16 %v1199, %v1198
        %v1210 = vpack.c.b16 %v1201, %v1200
        %v1211 = vpack.c.b16 %v1203, %v1202
        %1220 = vmatprep.subr.bf16.mxu0 0
        %1221 = vmatpush1.bf16.msra.mxu0 %v1204
        %1222 = vmatprep.subr.bf16.mxu0 0
        %1223 = vmatpush1.bf16.msra.mxu0 %v1205
        %1224 = vmatprep.subr.bf16.mxu0 0
        %1225 = vmatpush1.bf16.msra.mxu0 %v1206
        %1226 = vmatprep.subr.bf16.mxu0 0
        %1227 = vmatpush1.bf16.msra.mxu0 %v1207
        %1228 = vmatprep.subr.bf16.mxu0 0
        %1229 = vmatpush1.bf16.msra.mxu0 %v1208
        %1230 = vmatprep.subr.bf16.mxu0 0
        %1231 = vmatpush1.bf16.msra.mxu0 %v1209
        %1232 = vmatprep.subr.bf16.mxu0 0
        %1233 = vmatpush1.bf16.msra.mxu0 %v1210
        %1234 = vmatprep.subr.bf16.mxu0 0
        %1235 = vmatpush1.bf16.msra.mxu0 %v1211
        %1236 = vmatprep.subr.bf16.mxu0 0
        %1237 = vmatpush1.bf16.msra.mxu0 0
        %1238 = vmatprep.subr.bf16.mxu0 0
        %1239 = vmatpush1.bf16.msra.mxu0 0
        %1240 = vmatprep.subr.bf16.mxu0 0
        %1241 = vmatpush1.bf16.msra.mxu0 0
        %1242 = vmatprep.subr.bf16.mxu0 0
        %1243 = vmatpush1.bf16.msra.mxu0 0
        %1244 = vmatprep.subr.bf16.mxu0 0
        %1245 = vmatpush1.bf16.msra.mxu0 0
        %1246 = vmatprep.subr.bf16.mxu0 0
        %1247 = vmatpush1.bf16.msra.mxu0 0
        %1248 = vmatprep.subr.bf16.mxu0 0
        %1249 = vmatpush1.bf16.msra.mxu0 0
        %1250 = vmatprep.subr.bf16.mxu0 0
        %1251 = vmatpush1.bf16.msra.mxu0 0
        %1252 = vmatprep.mubr.bf16.mxu0 0
        %1253 = vmatmul.mubr.bf16.gmra.mrb[0].mxu0 %v1139
        %v1254 = vpop.f32.mrb[0].mxu0
        %v1255 = vadd.f32 %v1170, %v1254
        %v1256 = vpop.f32.mrb[0].mxu0
        %v1257 = vpop.f32.mrb[0].mxu0
        %v1258 = vadd.f32 %v1170, %v1257
        %v1259 = vpop.f32.mrb[0].mxu0
        %1260 = vmatprep.mubr.bf16.mxu0 0
        %1261 = vmatmul.mubr.bf16.gmra.mrb[0].mxu0 %v1140
        %v1262 = vpop.f32.mrb[0].mxu0
        %v1263 = vadd.f32 %v1170, %v1262
        %v1264 = vpop.f32.mrb[0].mxu0
        %v1265 = vpop.f32.mrb[0].mxu0
        %v1266 = vadd.f32 %v1170, %v1265
        %v1267 = vpop.f32.mrb[0].mxu0
        %1268 = vmatprep.mubr.bf16.mxu0 0
        %1269 = vmatmul.mubr.bf16.gmra.mrb[0].mxu0 %v1141
        %v1270 = vpop.f32.mrb[0].mxu0
        %v1271 = vadd.f32 %v1170, %v1270
        %v1272 = vpop.f32.mrb[0].mxu0
        %v1273 = vpop.f32.mrb[0].mxu0
        %v1274 = vadd.f32 %v1170, %v1273
        %v1275 = vpop.f32.mrb[0].mxu0
        %1276 = vmatprep.mubr.bf16.mxu0 0
        %1277 = vmatmul.mubr.bf16.gmra.mrb[0].mxu0 %v1142
        %v1278 = vpop.f32.mrb[0].mxu0
        %v1279 = vadd.f32 %v1170, %v1278
        %v1280 = vpop.f32.mrb[0].mxu0
        %v1281 = vpop.f32.mrb[0].mxu0
        %v1282 = vadd.f32 %v1170, %v1281
        %v1283 = vpop.f32.mrb[0].mxu0
        %1284 = vmatprep.mubr.bf16.mxu0 0
        %1285 = vmatmul.mubr.bf16.gmra.mrb[0].mxu0 %v1143
        %v1286 = vpop.f32.mrb[0].mxu0
        %v1287 = vadd.f32 %v1170, %v1286
        %v1288 = vpop.f32.mrb[0].mxu0
        %v1289 = vpop.f32.mrb[0].mxu0
        %v1290 = vadd.f32 %v1170, %v1289
        %v1291 = vpop.f32.mrb[0].mxu0
        %1292 = vmatprep.mubr.bf16.mxu0 0
        %1293 = vmatmul.mubr.bf16.gmra.mrb[0].mxu0 %v1144
        %v1294 = vpop.f32.mrb[0].mxu0
        %v1295 = vadd.f32 %v1170, %v1294
        %v1296 = vpop.f32.mrb[0].mxu0
        %v1297 = vpop.f32.mrb[0].mxu0
        %v1298 = vadd.f32 %v1170, %v1297
        %v1299 = vpop.f32.mrb[0].mxu0
        %1300 = vmatprep.mubr.bf16.mxu0 0
        %1301 = vmatmul.mubr.bf16.gmra.mrb[0].mxu0 %v1145
        %v1302 = vpop.f32.mrb[0].mxu0
        %v1303 = vadd.f32 %v1170, %v1302
        %v1304 = vpop.f32.mrb[0].mxu0
        %v1305 = vpop.f32.mrb[0].mxu0
        %v1306 = vadd.f32 %v1170, %v1305
        %v1307 = vpop.f32.mrb[0].mxu0
        %1308 = vmatprep.mubr.bf16.mxu0 0
        %1309 = vmatmul.mubr.bf16.gmra.mrb[0].mxu0 %v1146
        %v1310 = vpop.f32.mrb[0].mxu0
        %v1311 = vadd.f32 %v1170, %v1310
        %v1312 = vpop.f32.mrb[0].mxu0
        %v1313 = vpop.f32.mrb[0].mxu0
        %v1314 = vadd.f32 %v1170, %v1313
        %v1315 = vpop.f32.mrb[0].mxu0
        %1316 = vdwg.mxu0
        %vm1317 = vcmp.ge.f32.partialorder %v1255, 0.0
        %vm1318 = vcmp.ge.f32.partialorder %v1258, 0.0
        %vm1319 = vcmp.ge.f32.partialorder %v1263, 0.0
        %vm1320 = vcmp.ge.f32.partialorder %v1266, 0.0
        %vm1321 = vcmp.ge.f32.partialorder %v1271, 0.0
        %vm1322 = vcmp.ge.f32.partialorder %v1274, 0.0
        %vm1323 = vcmp.ge.f32.partialorder %v1279, 0.0
        %vm1324 = vcmp.ge.f32.partialorder %v1282, 0.0
        %vm1325 = vcmp.ge.f32.partialorder %v1287, 0.0
        %vm1326 = vcmp.ge.f32.partialorder %v1290, 0.0
        %vm1327 = vcmp.ge.f32.partialorder %v1295, 0.0
        %vm1328 = vcmp.ge.f32.partialorder %v1298, 0.0
        %vm1329 = vcmp.ge.f32.partialorder %v1303, 0.0
        %vm1330 = vcmp.ge.f32.partialorder %v1306, 0.0
        %vm1331 = vcmp.ge.f32.partialorder %v1311, 0.0
        %vm1332 = vcmp.ge.f32.partialorder %v1314, 0.0
        %v1333 = vmul.f32 %v1255, 0.2
        %v1334 = vmul.f32 %v1258, 0.2
        %v1335 = vmul.f32 %v1263, 0.2
        %v1336 = vmul.f32 %v1266, 0.2
        %v1337 = vmul.f32 %v1271, 0.2
        %v1338 = vmul.f32 %v1274, 0.2
        %v1339 = vmul.f32 %v1279, 0.2
        %v1340 = vmul.f32 %v1282, 0.2
        %v1341 = vmul.f32 %v1287, 0.2
        %v1342 = vmul.f32 %v1290, 0.2
        %v1343 = vmul.f32 %v1295, 0.2
        %v1344 = vmul.f32 %v1298, 0.2
        %v1345 = vmul.f32 %v1303, 0.2
        %v1346 = vmul.f32 %v1306, 0.2
        %v1347 = vmul.f32 %v1311, 0.2
        %v1348 = vmul.f32 %v1314, 0.2
        %v1349 = vsel %vm1317, %v1255, %v1333
        %v1350 = vsel %vm1318, %v1258, %v1334
        %v1351 = vsel %vm1319, %v1263, %v1335
        %v1352 = vsel %vm1320, %v1266, %v1336
        %v1353 = vsel %vm1321, %v1271, %v1337
        %v1354 = vsel %vm1322, %v1274, %v1338
        %v1355 = vsel %vm1323, %v1279, %v1339
        %v1356 = vsel %vm1324, %v1282, %v1340
        %v1357 = vsel %vm1325, %v1287, %v1341
        %v1358 = vsel %vm1326, %v1290, %v1342
        %v1359 = vsel %vm1327, %v1295, %v1343
        %v1360 = vsel %vm1328, %v1298, %v1344
        %v1361 = vsel %vm1329, %v1303, %v1345
        %v1362 = vsel %vm1330, %v1306, %v1346
        %v1363 = vsel %vm1331, %v1311, %v1347
        %v1364 = vsel %vm1332, %v1314, %v1348
        %v1365 = vpack.c.bf16 %v1350, %v1349
        %v1366 = vpack.c.bf16 %v1352, %v1351
        %v1367 = vpack.c.bf16 %v1354, %v1353
        %v1368 = vpack.c.bf16 %v1356, %v1355
        %v1369 = vpack.c.bf16 %v1358, %v1357
        %v1370 = vpack.c.bf16 %v1360, %v1359
        %v1371 = vpack.c.bf16 %v1362, %v1361
        %v1372 = vpack.c.bf16 %v1364, %v1363
        %s1373 = scalar_lea.vmem [#allocation5], 320
        %v1374 = vld [vmem:[%s1373] sm:$0xf]
        %v1375 = vld [vmem:[%s1373 + $0x4] sm:$0xf]
        %v1376 = vld [vmem:[%s1373 + $0x8] sm:$0xf]
        %v1377 = vld [vmem:[%s1373 + $0xc] sm:$0xf]
        %v1378 = vld [vmem:[%s1373 + $0x10] sm:$0xf]
        %v1379 = vld [vmem:[%s1373 + $0x14] sm:$0xf]
        %v1380 = vld [vmem:[%s1373 + $0x18] sm:$0xf]
        %v1381 = vld [vmem:[%s1373 + $0x1c] sm:$0xf]
        %v1382 = vld [vmem:[%s1373 + $0x20] sm:$0xf]
        %v1383 = vld [vmem:[%s1373 + $0x24] sm:$0xf]
        %v1384 = vld [vmem:[%s1373 + $0x28] sm:$0xf]
        %v1385 = vld [vmem:[%s1373 + $0x2c] sm:$0xf]
        %v1386 = vld [vmem:[%s1373 + $0x30] sm:$0xf]
        %v1387 = vld [vmem:[%s1373 + $0x34] sm:$0xf]
        %v1388 = vld [vmem:[%s1373 + $0x38] sm:$0xf]
        %v1389 = vld [vmem:[%s1373 + $0x3c] sm:$0xf]
        %s1390 = scalar_lea.vmem [#allocation7], 5
        %v1391 = vld [vmem:[%s1390] sm:$0x1]
        %v1393 = vlaneseq
        %v1394 = vshrl.u32 %v1393, 7
        %v1395 = vsub.s32 0, %v1394
        %v1396 = vrot.slane %v1391, %v1395
        %v1414 = vunpack.c.l.b16 %v1374
        %v1415 = vunpack.c.l.b16 %v1375
        %v1416 = vunpack.c.l.b16 %v1376
        %v1417 = vunpack.c.l.b16 %v1377
        %v1418 = vunpack.c.l.b16 %v1378
        %v1419 = vunpack.c.l.b16 %v1379
        %v1420 = vunpack.c.l.b16 %v1380
        %v1421 = vunpack.c.l.b16 %v1381
        %v1422 = vunpack.c.l.b16 %v1382
        %v1423 = vunpack.c.l.b16 %v1383
        %v1424 = vunpack.c.l.b16 %v1384
        %v1425 = vunpack.c.l.b16 %v1385
        %v1426 = vunpack.c.l.b16 %v1386
        %v1427 = vunpack.c.l.b16 %v1387
        %v1428 = vunpack.c.l.b16 %v1388
        %v1429 = vunpack.c.l.b16 %v1389
        %v1430 = vpack.c.b16 %v1415, %v1414
        %v1431 = vpack.c.b16 %v1417, %v1416
        %v1432 = vpack.c.b16 %v1419, %v1418
        %v1433 = vpack.c.b16 %v1421, %v1420
        %v1434 = vpack.c.b16 %v1423, %v1422
        %v1435 = vpack.c.b16 %v1425, %v1424
        %v1436 = vpack.c.b16 %v1427, %v1426
        %v1437 = vpack.c.b16 %v1429, %v1428
        %1446 = vmatprep.subr.bf16.mxu0 0
        %1447 = vmatpush1.bf16.msra.mxu0 %v1430
        %1448 = vmatprep.subr.bf16.mxu0 0
        %1449 = vmatpush1.bf16.msra.mxu0 %v1431
        %1450 = vmatprep.subr.bf16.mxu0 0
        %1451 = vmatpush1.bf16.msra.mxu0 %v1432
        %1452 = vmatprep.subr.bf16.mxu0 0
        %1453 = vmatpush1.bf16.msra.mxu0 %v1433
        %1454 = vmatprep.subr.bf16.mxu0 0
        %1455 = vmatpush1.bf16.msra.mxu0 %v1434
        %1456 = vmatprep.subr.bf16.mxu0 0
        %1457 = vmatpush1.bf16.msra.mxu0 %v1435
        %1458 = vmatprep.subr.bf16.mxu0 0
        %1459 = vmatpush1.bf16.msra.mxu0 %v1436
        %1460 = vmatprep.subr.bf16.mxu0 0
        %1461 = vmatpush1.bf16.msra.mxu0 %v1437
        %1462 = vmatprep.subr.bf16.mxu0 0
        %1463 = vmatpush1.bf16.msra.mxu0 0
        %1464 = vmatprep.subr.bf16.mxu0 0
        %1465 = vmatpush1.bf16.msra.mxu0 0
        %1466 = vmatprep.subr.bf16.mxu0 0
        %1467 = vmatpush1.bf16.msra.mxu0 0
        %1468 = vmatprep.subr.bf16.mxu0 0
        %1469 = vmatpush1.bf16.msra.mxu0 0
        %1470 = vmatprep.subr.bf16.mxu0 0
        %1471 = vmatpush1.bf16.msra.mxu0 0
        %1472 = vmatprep.subr.bf16.mxu0 0
        %1473 = vmatpush1.bf16.msra.mxu0 0
        %1474 = vmatprep.subr.bf16.mxu0 0
        %1475 = vmatpush1.bf16.msra.mxu0 0
        %1476 = vmatprep.subr.bf16.mxu0 0
        %1477 = vmatpush1.bf16.msra.mxu0 0
        %1478 = vmatprep.mubr.bf16.mxu0 0
        %1479 = vmatmul.mubr.bf16.gmra.mrb[0].mxu0 %v1365
        %v1480 = vpop.f32.mrb[0].mxu0
        %v1481 = vadd.f32 %v1396, %v1480
        %v1482 = vpop.f32.mrb[0].mxu0
        %v1483 = vpop.f32.mrb[0].mxu0
        %v1484 = vadd.f32 %v1396, %v1483
        %v1485 = vpop.f32.mrb[0].mxu0
        %1486 = vmatprep.mubr.bf16.mxu0 0
        %1487 = vmatmul.mubr.bf16.gmra.mrb[0].mxu0 %v1366
        %v1488 = vpop.f32.mrb[0].mxu0
        %v1489 = vadd.f32 %v1396, %v1488
        %v1490 = vpop.f32.mrb[0].mxu0
        %v1491 = vpop.f32.mrb[0].mxu0
        %v1492 = vadd.f32 %v1396, %v1491
        %v1493 = vpop.f32.mrb[0].mxu0
        %1494 = vmatprep.mubr.bf16.mxu0 0
        %1495 = vmatmul.mubr.bf16.gmra.mrb[0].mxu0 %v1367
        %v1496 = vpop.f32.mrb[0].mxu0
        %v1497 = vadd.f32 %v1396, %v1496
        %v1498 = vpop.f32.mrb[0].mxu0
        %v1499 = vpop.f32.mrb[0].mxu0
        %v1500 = vadd.f32 %v1396, %v1499
        %v1501 = vpop.f32.mrb[0].mxu0
        %1502 = vmatprep.mubr.bf16.mxu0 0
        %1503 = vmatmul.mubr.bf16.gmra.mrb[0].mxu0 %v1368
        %v1504 = vpop.f32.mrb[0].mxu0
        %v1505 = vadd.f32 %v1396, %v1504
        %v1506 = vpop.f32.mrb[0].mxu0
        %v1507 = vpop.f32.mrb[0].mxu0
        %v1508 = vadd.f32 %v1396, %v1507
        %v1509 = vpop.f32.mrb[0].mxu0
        %1510 = vmatprep.mubr.bf16.mxu0 0
        %1511 = vmatmul.mubr.bf16.gmra.mrb[0].mxu0 %v1369
        %v1512 = vpop.f32.mrb[0].mxu0
        %v1513 = vadd.f32 %v1396, %v1512
        %v1514 = vpop.f32.mrb[0].mxu0
        %v1515 = vpop.f32.mrb[0].mxu0
        %v1516 = vadd.f32 %v1396, %v1515
        %v1517 = vpop.f32.mrb[0].mxu0
        %1518 = vmatprep.mubr.bf16.mxu0 0
        %1519 = vmatmul.mubr.bf16.gmra.mrb[0].mxu0 %v1370
        %v1520 = vpop.f32.mrb[0].mxu0
        %v1521 = vadd.f32 %v1396, %v1520
        %v1522 = vpop.f32.mrb[0].mxu0
        %v1523 = vpop.f32.mrb[0].mxu0
        %v1524 = vadd.f32 %v1396, %v1523
        %v1525 = vpop.f32.mrb[0].mxu0
        %1526 = vmatprep.mubr.bf16.mxu0 0
        %1527 = vmatmul.mubr.bf16.gmra.mrb[0].mxu0 %v1371
        %v1528 = vpop.f32.mrb[0].mxu0
        %v1529 = vadd.f32 %v1396, %v1528
        %v1530 = vpop.f32.mrb[0].mxu0
        %v1531 = vpop.f32.mrb[0].mxu0
        %v1532 = vadd.f32 %v1396, %v1531
        %v1533 = vpop.f32.mrb[0].mxu0
        %1534 = vmatprep.mubr.bf16.mxu0 0
        %1535 = vmatmul.mubr.bf16.gmra.mrb[0].mxu0 %v1372
        %v1536 = vpop.f32.mrb[0].mxu0
        %v1537 = vadd.f32 %v1396, %v1536
        %v1538 = vpop.f32.mrb[0].mxu0
        %v1539 = vpop.f32.mrb[0].mxu0
        %v1540 = vadd.f32 %v1396, %v1539
        %v1541 = vpop.f32.mrb[0].mxu0
        %1542 = vdwg.mxu0
        %vm1543 = vcmp.ge.f32.partialorder %v1481, 0.0
        %vm1544 = vcmp.ge.f32.partialorder %v1484, 0.0
        %vm1545 = vcmp.ge.f32.partialorder %v1489, 0.0
        %vm1546 = vcmp.ge.f32.partialorder %v1492, 0.0
        %vm1547 = vcmp.ge.f32.partialorder %v1497, 0.0
        %vm1548 = vcmp.ge.f32.partialorder %v1500, 0.0
        %vm1549 = vcmp.ge.f32.partialorder %v1505, 0.0
        %vm1550 = vcmp.ge.f32.partialorder %v1508, 0.0
        %vm1551 = vcmp.ge.f32.partialorder %v1513, 0.0
        %vm1552 = vcmp.ge.f32.partialorder %v1516, 0.0
        %vm1553 = vcmp.ge.f32.partialorder %v1521, 0.0
        %vm1554 = vcmp.ge.f32.partialorder %v1524, 0.0
        %vm1555 = vcmp.ge.f32.partialorder %v1529, 0.0
        %vm1556 = vcmp.ge.f32.partialorder %v1532, 0.0
        %vm1557 = vcmp.ge.f32.partialorder %v1537, 0.0
        %vm1558 = vcmp.ge.f32.partialorder %v1540, 0.0
        %v1559 = vmul.f32 %v1481, 0.2
        %v1560 = vmul.f32 %v1484, 0.2
        %v1561 = vmul.f32 %v1489, 0.2
        %v1562 = vmul.f32 %v1492, 0.2
        %v1563 = vmul.f32 %v1497, 0.2
        %v1564 = vmul.f32 %v1500, 0.2
        %v1565 = vmul.f32 %v1505, 0.2
        %v1566 = vmul.f32 %v1508, 0.2
        %v1567 = vmul.f32 %v1513, 0.2
        %v1568 = vmul.f32 %v1516, 0.2
        %v1569 = vmul.f32 %v1521, 0.2
        %v1570 = vmul.f32 %v1524, 0.2
        %v1571 = vmul.f32 %v1529, 0.2
        %v1572 = vmul.f32 %v1532, 0.2
        %v1573 = vmul.f32 %v1537, 0.2
        %v1574 = vmul.f32 %v1540, 0.2
        %v1575 = vsel %vm1543, %v1481, %v1559
        %v1576 = vsel %vm1544, %v1484, %v1560
        %v1577 = vsel %vm1545, %v1489, %v1561
        %v1578 = vsel %vm1546, %v1492, %v1562
        %v1579 = vsel %vm1547, %v1497, %v1563
        %v1580 = vsel %vm1548, %v1500, %v1564
        %v1581 = vsel %vm1549, %v1505, %v1565
        %v1582 = vsel %vm1550, %v1508, %v1566
        %v1583 = vsel %vm1551, %v1513, %v1567
        %v1584 = vsel %vm1552, %v1516, %v1568
        %v1585 = vsel %vm1553, %v1521, %v1569
        %v1586 = vsel %vm1554, %v1524, %v1570
        %v1587 = vsel %vm1555, %v1529, %v1571
        %v1588 = vsel %vm1556, %v1532, %v1572
        %v1589 = vsel %vm1557, %v1537, %v1573
        %v1590 = vsel %vm1558, %v1540, %v1574
        %v1591 = vpack.c.bf16 %v1576, %v1575
        %v1592 = vpack.c.bf16 %v1578, %v1577
        %v1593 = vpack.c.bf16 %v1580, %v1579
        %v1594 = vpack.c.bf16 %v1582, %v1581
        %v1595 = vpack.c.bf16 %v1584, %v1583
        %v1596 = vpack.c.bf16 %v1586, %v1585
        %v1597 = vpack.c.bf16 %v1588, %v1587
        %v1598 = vpack.c.bf16 %v1590, %v1589
        %s1599 = scalar_lea.vmem [#allocation5], 384
        %v1600 = vld [vmem:[%s1599] sm:$0xf]
        %v1601 = vld [vmem:[%s1599 + $0x4] sm:$0xf]
        %v1602 = vld [vmem:[%s1599 + $0x8] sm:$0xf]
        %v1603 = vld [vmem:[%s1599 + $0xc] sm:$0xf]
        %v1604 = vld [vmem:[%s1599 + $0x10] sm:$0xf]
        %v1605 = vld [vmem:[%s1599 + $0x14] sm:$0xf]
        %v1606 = vld [vmem:[%s1599 + $0x18] sm:$0xf]
        %v1607 = vld [vmem:[%s1599 + $0x1c] sm:$0xf]
        %v1608 = vld [vmem:[%s1599 + $0x20] sm:$0xf]
        %v1609 = vld [vmem:[%s1599 + $0x24] sm:$0xf]
        %v1610 = vld [vmem:[%s1599 + $0x28] sm:$0xf]
        %v1611 = vld [vmem:[%s1599 + $0x2c] sm:$0xf]
        %v1612 = vld [vmem:[%s1599 + $0x30] sm:$0xf]
        %v1613 = vld [vmem:[%s1599 + $0x34] sm:$0xf]
        %v1614 = vld [vmem:[%s1599 + $0x38] sm:$0xf]
        %v1615 = vld [vmem:[%s1599 + $0x3c] sm:$0xf]
        %s1616 = scalar_lea.vmem [#allocation7], 6
        %v1617 = vld [vmem:[%s1616] sm:$0x1]
        %v1619 = vlaneseq
        %v1620 = vshrl.u32 %v1619, 7
        %v1621 = vsub.s32 0, %v1620
        %v1622 = vrot.slane %v1617, %v1621
        %v1640 = vunpack.c.l.b16 %v1600
        %v1641 = vunpack.c.l.b16 %v1601
        %v1642 = vunpack.c.l.b16 %v1602
        %v1643 = vunpack.c.l.b16 %v1603
        %v1644 = vunpack.c.l.b16 %v1604
        %v1645 = vunpack.c.l.b16 %v1605
        %v1646 = vunpack.c.l.b16 %v1606
        %v1647 = vunpack.c.l.b16 %v1607
        %v1648 = vunpack.c.l.b16 %v1608
        %v1649 = vunpack.c.l.b16 %v1609
        %v1650 = vunpack.c.l.b16 %v1610
        %v1651 = vunpack.c.l.b16 %v1611
        %v1652 = vunpack.c.l.b16 %v1612
        %v1653 = vunpack.c.l.b16 %v1613
        %v1654 = vunpack.c.l.b16 %v1614
        %v1655 = vunpack.c.l.b16 %v1615
        %v1656 = vpack.c.b16 %v1641, %v1640
        %v1657 = vpack.c.b16 %v1643, %v1642
        %v1658 = vpack.c.b16 %v1645, %v1644
        %v1659 = vpack.c.b16 %v1647, %v1646
        %v1660 = vpack.c.b16 %v1649, %v1648
        %v1661 = vpack.c.b16 %v1651, %v1650
        %v1662 = vpack.c.b16 %v1653, %v1652
        %v1663 = vpack.c.b16 %v1655, %v1654
        %1672 = vmatprep.subr.bf16.mxu0 0
        %1673 = vmatpush1.bf16.msra.mxu0 %v1656
        %1674 = vmatprep.subr.bf16.mxu0 0
        %1675 = vmatpush1.bf16.msra.mxu0 %v1657
        %1676 = vmatprep.subr.bf16.mxu0 0
        %1677 = vmatpush1.bf16.msra.mxu0 %v1658
        %1678 = vmatprep.subr.bf16.mxu0 0
        %1679 = vmatpush1.bf16.msra.mxu0 %v1659
        %1680 = vmatprep.subr.bf16.mxu0 0
        %1681 = vmatpush1.bf16.msra.mxu0 %v1660
        %1682 = vmatprep.subr.bf16.mxu0 0
        %1683 = vmatpush1.bf16.msra.mxu0 %v1661
        %1684 = vmatprep.subr.bf16.mxu0 0
        %1685 = vmatpush1.bf16.msra.mxu0 %v1662
        %1686 = vmatprep.subr.bf16.mxu0 0
        %1687 = vmatpush1.bf16.msra.mxu0 %v1663
        %1688 = vmatprep.subr.bf16.mxu0 0
        %1689 = vmatpush1.bf16.msra.mxu0 0
        %1690 = vmatprep.subr.bf16.mxu0 0
        %1691 = vmatpush1.bf16.msra.mxu0 0
        %1692 = vmatprep.subr.bf16.mxu0 0
        %1693 = vmatpush1.bf16.msra.mxu0 0
        %1694 = vmatprep.subr.bf16.mxu0 0
        %1695 = vmatpush1.bf16.msra.mxu0 0
        %1696 = vmatprep.subr.bf16.mxu0 0
        %1697 = vmatpush1.bf16.msra.mxu0 0
        %1698 = vmatprep.subr.bf16.mxu0 0
        %1699 = vmatpush1.bf16.msra.mxu0 0
        %1700 = vmatprep.subr.bf16.mxu0 0
        %1701 = vmatpush1.bf16.msra.mxu0 0
        %1702 = vmatprep.subr.bf16.mxu0 0
        %1703 = vmatpush1.bf16.msra.mxu0 0
        %1704 = vmatprep.mubr.bf16.mxu0 0
        %1705 = vmatmul.mubr.bf16.gmra.mrb[0].mxu0 %v1591
        %v1706 = vpop.f32.mrb[0].mxu0
        %v1707 = vadd.f32 %v1622, %v1706
        %v1708 = vpop.f32.mrb[0].mxu0
        %v1709 = vpop.f32.mrb[0].mxu0
        %v1710 = vadd.f32 %v1622, %v1709
        %v1711 = vpop.f32.mrb[0].mxu0
        %1712 = vmatprep.mubr.bf16.mxu0 0
        %1713 = vmatmul.mubr.bf16.gmra.mrb[0].mxu0 %v1592
        %v1714 = vpop.f32.mrb[0].mxu0
        %v1715 = vadd.f32 %v1622, %v1714
        %v1716 = vpop.f32.mrb[0].mxu0
        %v1717 = vpop.f32.mrb[0].mxu0
        %v1718 = vadd.f32 %v1622, %v1717
        %v1719 = vpop.f32.mrb[0].mxu0
        %1720 = vmatprep.mubr.bf16.mxu0 0
        %1721 = vmatmul.mubr.bf16.gmra.mrb[0].mxu0 %v1593
        %v1722 = vpop.f32.mrb[0].mxu0
        %v1723 = vadd.f32 %v1622, %v1722
        %v1724 = vpop.f32.mrb[0].mxu0
        %v1725 = vpop.f32.mrb[0].mxu0
        %v1726 = vadd.f32 %v1622, %v1725
        %v1727 = vpop.f32.mrb[0].mxu0
        %1728 = vmatprep.mubr.bf16.mxu0 0
        %1729 = vmatmul.mubr.bf16.gmra.mrb[0].mxu0 %v1594
        %v1730 = vpop.f32.mrb[0].mxu0
        %v1731 = vadd.f32 %v1622, %v1730
        %v1732 = vpop.f32.mrb[0].mxu0
        %v1733 = vpop.f32.mrb[0].mxu0
        %v1734 = vadd.f32 %v1622, %v1733
        %v1735 = vpop.f32.mrb[0].mxu0
        %1736 = vmatprep.mubr.bf16.mxu0 0
        %1737 = vmatmul.mubr.bf16.gmra.mrb[0].mxu0 %v1595
        %v1738 = vpop.f32.mrb[0].mxu0
        %v1739 = vadd.f32 %v1622, %v1738
        %v1740 = vpop.f32.mrb[0].mxu0
        %v1741 = vpop.f32.mrb[0].mxu0
        %v1742 = vadd.f32 %v1622, %v1741
        %v1743 = vpop.f32.mrb[0].mxu0
        %1744 = vmatprep.mubr.bf16.mxu0 0
        %1745 = vmatmul.mubr.bf16.gmra.mrb[0].mxu0 %v1596
        %v1746 = vpop.f32.mrb[0].mxu0
        %v1747 = vadd.f32 %v1622, %v1746
        %v1748 = vpop.f32.mrb[0].mxu0
        %v1749 = vpop.f32.mrb[0].mxu0
        %v1750 = vadd.f32 %v1622, %v1749
        %v1751 = vpop.f32.mrb[0].mxu0
        %1752 = vmatprep.mubr.bf16.mxu0 0
        %1753 = vmatmul.mubr.bf16.gmra.mrb[0].mxu0 %v1597
        %v1754 = vpop.f32.mrb[0].mxu0
        %v1755 = vadd.f32 %v1622, %v1754
        %v1756 = vpop.f32.mrb[0].mxu0
        %v1757 = vpop.f32.mrb[0].mxu0
        %v1758 = vadd.f32 %v1622, %v1757
        %v1759 = vpop.f32.mrb[0].mxu0
        %1760 = vmatprep.mubr.bf16.mxu0 0
        %1761 = vmatmul.mubr.bf16.gmra.mrb[0].mxu0 %v1598
        %v1762 = vpop.f32.mrb[0].mxu0
        %v1763 = vadd.f32 %v1622, %v1762
        %v1764 = vpop.f32.mrb[0].mxu0
        %v1765 = vpop.f32.mrb[0].mxu0
        %v1766 = vadd.f32 %v1622, %v1765
        %v1767 = vpop.f32.mrb[0].mxu0
        %1768 = vdwg.mxu0
        %vm1769 = vcmp.ge.f32.partialorder %v1707, 0.0
        %vm1770 = vcmp.ge.f32.partialorder %v1710, 0.0
        %vm1771 = vcmp.ge.f32.partialorder %v1715, 0.0
        %vm1772 = vcmp.ge.f32.partialorder %v1718, 0.0
        %vm1773 = vcmp.ge.f32.partialorder %v1723, 0.0
        %vm1774 = vcmp.ge.f32.partialorder %v1726, 0.0
        %vm1775 = vcmp.ge.f32.partialorder %v1731, 0.0
        %vm1776 = vcmp.ge.f32.partialorder %v1734, 0.0
        %vm1777 = vcmp.ge.f32.partialorder %v1739, 0.0
        %vm1778 = vcmp.ge.f32.partialorder %v1742, 0.0
        %vm1779 = vcmp.ge.f32.partialorder %v1747, 0.0
        %vm1780 = vcmp.ge.f32.partialorder %v1750, 0.0
        %vm1781 = vcmp.ge.f32.partialorder %v1755, 0.0
        %vm1782 = vcmp.ge.f32.partialorder %v1758, 0.0
        %vm1783 = vcmp.ge.f32.partialorder %v1763, 0.0
        %vm1784 = vcmp.ge.f32.partialorder %v1766, 0.0
        %v1785 = vmul.f32 %v1707, 0.2
        %v1786 = vmul.f32 %v1710, 0.2
        %v1787 = vmul.f32 %v1715, 0.2
        %v1788 = vmul.f32 %v1718, 0.2
        %v1789 = vmul.f32 %v1723, 0.2
        %v1790 = vmul.f32 %v1726, 0.2
        %v1791 = vmul.f32 %v1731, 0.2
        %v1792 = vmul.f32 %v1734, 0.2
        %v1793 = vmul.f32 %v1739, 0.2
        %v1794 = vmul.f32 %v1742, 0.2
        %v1795 = vmul.f32 %v1747, 0.2
        %v1796 = vmul.f32 %v1750, 0.2
        %v1797 = vmul.f32 %v1755, 0.2
        %v1798 = vmul.f32 %v1758, 0.2
        %v1799 = vmul.f32 %v1763, 0.2
        %v1800 = vmul.f32 %v1766, 0.2
        %v1801 = vsel %vm1769, %v1707, %v1785
        %v1802 = vsel %vm1770, %v1710, %v1786
        %v1803 = vsel %vm1771, %v1715, %v1787
        %v1804 = vsel %vm1772, %v1718, %v1788
        %v1805 = vsel %vm1773, %v1723, %v1789
        %v1806 = vsel %vm1774, %v1726, %v1790
        %v1807 = vsel %vm1775, %v1731, %v1791
        %v1808 = vsel %vm1776, %v1734, %v1792
        %v1809 = vsel %vm1777, %v1739, %v1793
        %v1810 = vsel %vm1778, %v1742, %v1794
        %v1811 = vsel %vm1779, %v1747, %v1795
        %v1812 = vsel %vm1780, %v1750, %v1796
        %v1813 = vsel %vm1781, %v1755, %v1797
        %v1814 = vsel %vm1782, %v1758, %v1798
        %v1815 = vsel %vm1783, %v1763, %v1799
        %v1816 = vsel %vm1784, %v1766, %v1800
        %v1817 = vpack.c.bf16 %v1802, %v1801
        %v1818 = vpack.c.bf16 %v1804, %v1803
        %v1819 = vpack.c.bf16 %v1806, %v1805
        %v1820 = vpack.c.bf16 %v1808, %v1807
        %v1821 = vpack.c.bf16 %v1810, %v1809
        %v1822 = vpack.c.bf16 %v1812, %v1811
        %v1823 = vpack.c.bf16 %v1814, %v1813
        %v1824 = vpack.c.bf16 %v1816, %v1815
        %s1825 = scalar_lea.vmem [#allocation5], 448
        %v1826 = vld [vmem:[%s1825] sm:$0xf]
        %v1827 = vld [vmem:[%s1825 + $0x4] sm:$0xf]
        %v1828 = vld [vmem:[%s1825 + $0x8] sm:$0xf]
        %v1829 = vld [vmem:[%s1825 + $0xc] sm:$0xf]
        %v1830 = vld [vmem:[%s1825 + $0x10] sm:$0xf]
        %v1831 = vld [vmem:[%s1825 + $0x14] sm:$0xf]
        %v1832 = vld [vmem:[%s1825 + $0x18] sm:$0xf]
        %v1833 = vld [vmem:[%s1825 + $0x1c] sm:$0xf]
        %v1834 = vld [vmem:[%s1825 + $0x20] sm:$0xf]
        %v1835 = vld [vmem:[%s1825 + $0x24] sm:$0xf]
        %v1836 = vld [vmem:[%s1825 + $0x28] sm:$0xf]
        %v1837 = vld [vmem:[%s1825 + $0x2c] sm:$0xf]
        %v1838 = vld [vmem:[%s1825 + $0x30] sm:$0xf]
        %v1839 = vld [vmem:[%s1825 + $0x34] sm:$0xf]
        %v1840 = vld [vmem:[%s1825 + $0x38] sm:$0xf]
        %v1841 = vld [vmem:[%s1825 + $0x3c] sm:$0xf]
        %s1842 = scalar_lea.vmem [#allocation7], 7
        %v1843 = vld [vmem:[%s1842] sm:$0x1]
        %v1845 = vlaneseq
        %v1846 = vshrl.u32 %v1845, 7
        %v1847 = vsub.s32 0, %v1846
        %v1848 = vrot.slane %v1843, %v1847
        %v1866 = vunpack.c.l.b16 %v1826
        %v1867 = vunpack.c.l.b16 %v1827
        %v1868 = vunpack.c.l.b16 %v1828
        %v1869 = vunpack.c.l.b16 %v1829
        %v1870 = vunpack.c.l.b16 %v1830
        %v1871 = vunpack.c.l.b16 %v1831
        %v1872 = vunpack.c.l.b16 %v1832
        %v1873 = vunpack.c.l.b16 %v1833
        %v1874 = vunpack.c.l.b16 %v1834
        %v1875 = vunpack.c.l.b16 %v1835
        %v1876 = vunpack.c.l.b16 %v1836
        %v1877 = vunpack.c.l.b16 %v1837
        %v1878 = vunpack.c.l.b16 %v1838
        %v1879 = vunpack.c.l.b16 %v1839
        %v1880 = vunpack.c.l.b16 %v1840
        %v1881 = vunpack.c.l.b16 %v1841
        %v1882 = vpack.c.b16 %v1867, %v1866
        %v1883 = vpack.c.b16 %v1869, %v1868
        %v1884 = vpack.c.b16 %v1871, %v1870
        %v1885 = vpack.c.b16 %v1873, %v1872
        %v1886 = vpack.c.b16 %v1875, %v1874
        %v1887 = vpack.c.b16 %v1877, %v1876
        %v1888 = vpack.c.b16 %v1879, %v1878
        %v1889 = vpack.c.b16 %v1881, %v1880
        %1898 = vmatprep.subr.bf16.mxu0 0
        %1899 = vmatpush1.bf16.msra.mxu0 %v1882
        %1900 = vmatprep.subr.bf16.mxu0 0
        %1901 = vmatpush1.bf16.msra.mxu0 %v1883
        %1902 = vmatprep.subr.bf16.mxu0 0
        %1903 = vmatpush1.bf16.msra.mxu0 %v1884
        %1904 = vmatprep.subr.bf16.mxu0 0
        %1905 = vmatpush1.bf16.msra.mxu0 %v1885
        %1906 = vmatprep.subr.bf16.mxu0 0
        %1907 = vmatpush1.bf16.msra.mxu0 %v1886
        %1908 = vmatprep.subr.bf16.mxu0 0
        %1909 = vmatpush1.bf16.msra.mxu0 %v1887
        %1910 = vmatprep.subr.bf16.mxu0 0
        %1911 = vmatpush1.bf16.msra.mxu0 %v1888
        %1912 = vmatprep.subr.bf16.mxu0 0
        %1913 = vmatpush1.bf16.msra.mxu0 %v1889
        %1914 = vmatprep.subr.bf16.mxu0 0
        %1915 = vmatpush1.bf16.msra.mxu0 0
        %1916 = vmatprep.subr.bf16.mxu0 0
        %1917 = vmatpush1.bf16.msra.mxu0 0
        %1918 = vmatprep.subr.bf16.mxu0 0
        %1919 = vmatpush1.bf16.msra.mxu0 0
        %1920 = vmatprep.subr.bf16.mxu0 0
        %1921 = vmatpush1.bf16.msra.mxu0 0
        %1922 = vmatprep.subr.bf16.mxu0 0
        %1923 = vmatpush1.bf16.msra.mxu0 0
        %1924 = vmatprep.subr.bf16.mxu0 0
        %1925 = vmatpush1.bf16.msra.mxu0 0
        %1926 = vmatprep.subr.bf16.mxu0 0
        %1927 = vmatpush1.bf16.msra.mxu0 0
        %1928 = vmatprep.subr.bf16.mxu0 0
        %1929 = vmatpush1.bf16.msra.mxu0 0
        %1930 = vmatprep.mubr.bf16.mxu0 0
        %1931 = vmatmul.mubr.bf16.gmra.mrb[0].mxu0 %v1817
        %v1932 = vpop.f32.mrb[0].mxu0
        %v1933 = vadd.f32 %v1848, %v1932
        %v1934 = vpop.f32.mrb[0].mxu0
        %v1935 = vpop.f32.mrb[0].mxu0
        %v1936 = vadd.f32 %v1848, %v1935
        %v1937 = vpop.f32.mrb[0].mxu0
        %1938 = vmatprep.mubr.bf16.mxu0 0
        %1939 = vmatmul.mubr.bf16.gmra.mrb[0].mxu0 %v1818
        %v1940 = vpop.f32.mrb[0].mxu0
        %v1941 = vadd.f32 %v1848, %v1940
        %v1942 = vpop.f32.mrb[0].mxu0
        %v1943 = vpop.f32.mrb[0].mxu0
        %v1944 = vadd.f32 %v1848, %v1943
        %v1945 = vpop.f32.mrb[0].mxu0
        %1946 = vmatprep.mubr.bf16.mxu0 0
        %1947 = vmatmul.mubr.bf16.gmra.mrb[0].mxu0 %v1819
        %v1948 = vpop.f32.mrb[0].mxu0
        %v1949 = vadd.f32 %v1848, %v1948
        %v1950 = vpop.f32.mrb[0].mxu0
        %v1951 = vpop.f32.mrb[0].mxu0
        %v1952 = vadd.f32 %v1848, %v1951
        %v1953 = vpop.f32.mrb[0].mxu0
        %1954 = vmatprep.mubr.bf16.mxu0 0
        %1955 = vmatmul.mubr.bf16.gmra.mrb[0].mxu0 %v1820
        %v1956 = vpop.f32.mrb[0].mxu0
        %v1957 = vadd.f32 %v1848, %v1956
        %v1958 = vpop.f32.mrb[0].mxu0
        %v1959 = vpop.f32.mrb[0].mxu0
        %v1960 = vadd.f32 %v1848, %v1959
        %v1961 = vpop.f32.mrb[0].mxu0
        %1962 = vmatprep.mubr.bf16.mxu0 0
        %1963 = vmatmul.mubr.bf16.gmra.mrb[0].mxu0 %v1821
        %v1964 = vpop.f32.mrb[0].mxu0
        %v1965 = vadd.f32 %v1848, %v1964
        %v1966 = vpop.f32.mrb[0].mxu0
        %v1967 = vpop.f32.mrb[0].mxu0
        %v1968 = vadd.f32 %v1848, %v1967
        %v1969 = vpop.f32.mrb[0].mxu0
        %1970 = vmatprep.mubr.bf16.mxu0 0
        %1971 = vmatmul.mubr.bf16.gmra.mrb[0].mxu0 %v1822
        %v1972 = vpop.f32.mrb[0].mxu0
        %v1973 = vadd.f32 %v1848, %v1972
        %v1974 = vpop.f32.mrb[0].mxu0
        %v1975 = vpop.f32.mrb[0].mxu0
        %v1976 = vadd.f32 %v1848, %v1975
        %v1977 = vpop.f32.mrb[0].mxu0
        %1978 = vmatprep.mubr.bf16.mxu0 0
        %1979 = vmatmul.mubr.bf16.gmra.mrb[0].mxu0 %v1823
        %v1980 = vpop.f32.mrb[0].mxu0
        %v1981 = vadd.f32 %v1848, %v1980
        %v1982 = vpop.f32.mrb[0].mxu0
        %v1983 = vpop.f32.mrb[0].mxu0
        %v1984 = vadd.f32 %v1848, %v1983
        %v1985 = vpop.f32.mrb[0].mxu0
        %1986 = vmatprep.mubr.bf16.mxu0 0
        %1987 = vmatmul.mubr.bf16.gmra.mrb[0].mxu0 %v1824
        %v1988 = vpop.f32.mrb[0].mxu0
        %v1989 = vadd.f32 %v1848, %v1988
        %v1990 = vpop.f32.mrb[0].mxu0
        %v1991 = vpop.f32.mrb[0].mxu0
        %v1992 = vadd.f32 %v1848, %v1991
        %v1993 = vpop.f32.mrb[0].mxu0
        %1994 = vdwg.mxu0
        %vm1995 = vcmp.ge.f32.partialorder %v1933, 0.0
        %vm1996 = vcmp.ge.f32.partialorder %v1936, 0.0
        %vm1997 = vcmp.ge.f32.partialorder %v1941, 0.0
        %vm1998 = vcmp.ge.f32.partialorder %v1944, 0.0
        %vm1999 = vcmp.ge.f32.partialorder %v1949, 0.0
        %vm2000 = vcmp.ge.f32.partialorder %v1952, 0.0
        %vm2001 = vcmp.ge.f32.partialorder %v1957, 0.0
        %vm2002 = vcmp.ge.f32.partialorder %v1960, 0.0
        %vm2003 = vcmp.ge.f32.partialorder %v1965, 0.0
        %vm2004 = vcmp.ge.f32.partialorder %v1968, 0.0
        %vm2005 = vcmp.ge.f32.partialorder %v1973, 0.0
        %vm2006 = vcmp.ge.f32.partialorder %v1976, 0.0
        %vm2007 = vcmp.ge.f32.partialorder %v1981, 0.0
        %vm2008 = vcmp.ge.f32.partialorder %v1984, 0.0
        %vm2009 = vcmp.ge.f32.partialorder %v1989, 0.0
        %vm2010 = vcmp.ge.f32.partialorder %v1992, 0.0
        %v2011 = vmul.f32 %v1933, 0.2
        %v2012 = vmul.f32 %v1936, 0.2
        %v2013 = vmul.f32 %v1941, 0.2
        %v2014 = vmul.f32 %v1944, 0.2
        %v2015 = vmul.f32 %v1949, 0.2
        %v2016 = vmul.f32 %v1952, 0.2
        %v2017 = vmul.f32 %v1957, 0.2
        %v2018 = vmul.f32 %v1960, 0.2
        %v2019 = vmul.f32 %v1965, 0.2
        %v2020 = vmul.f32 %v1968, 0.2
        %v2021 = vmul.f32 %v1973, 0.2
        %v2022 = vmul.f32 %v1976, 0.2
        %v2023 = vmul.f32 %v1981, 0.2
        %v2024 = vmul.f32 %v1984, 0.2
        %v2025 = vmul.f32 %v1989, 0.2
        %v2026 = vmul.f32 %v1992, 0.2
        %v2027 = vsel %vm1995, %v1933, %v2011
        %v2028 = vsel %vm1996, %v1936, %v2012
        %v2029 = vsel %vm1997, %v1941, %v2013
        %v2030 = vsel %vm1998, %v1944, %v2014
        %v2031 = vsel %vm1999, %v1949, %v2015
        %v2032 = vsel %vm2000, %v1952, %v2016
        %v2033 = vsel %vm2001, %v1957, %v2017
        %v2034 = vsel %vm2002, %v1960, %v2018
        %v2035 = vsel %vm2003, %v1965, %v2019
        %v2036 = vsel %vm2004, %v1968, %v2020
        %v2037 = vsel %vm2005, %v1973, %v2021
        %v2038 = vsel %vm2006, %v1976, %v2022
        %v2039 = vsel %vm2007, %v1981, %v2023
        %v2040 = vsel %vm2008, %v1984, %v2024
        %v2041 = vsel %vm2009, %v1989, %v2025
        %v2042 = vsel %vm2010, %v1992, %v2026
        %2043 = vst [vmem:[%s217] sm:$0xff] %v2027
        %2044 = vst [vmem:[%s217 + $0x8] sm:$0xff] %v2028
        %2045 = vst [vmem:[%s217 + $0x10] sm:$0xff] %v2029
        %2046 = vst [vmem:[%s217 + $0x18] sm:$0xff] %v2030
        %2047 = vst [vmem:[%s217 + $0x20] sm:$0xff] %v2031
        %2048 = vst [vmem:[%s217 + $0x28] sm:$0xff] %v2032
        %2049 = vst [vmem:[%s217 + $0x30] sm:$0xff] %v2033
        %2050 = vst [vmem:[%s217 + $0x38] sm:$0xff] %v2034
        %2051 = vst [vmem:[%s217 + $0x40] sm:$0xff] %v2035
        %2052 = vst [vmem:[%s217 + $0x48] sm:$0xff] %v2036
        %2053 = vst [vmem:[%s217 + $0x50] sm:$0xff] %v2037
        %2054 = vst [vmem:[%s217 + $0x58] sm:$0xff] %v2038
        %2055 = vst [vmem:[%s217 + $0x60] sm:$0xff] %v2039
        %2056 = vst [vmem:[%s217 + $0x68] sm:$0xff] %v2040
        %2057 = vst [vmem:[%s217 + $0x70] sm:$0xff] %v2041
        %2058 = vst [vmem:[%s217 + $0x78] sm:$0xff] %v2042
        %s2059 = sand.u32 %s97, 1
        %s2060 = scalar_lea.sflag [#allocation4], %s2059
        %s2061 = sand.u32 %s97, 1
        %s2062 = smul.addr %s2061, 128
        %s2063 = scalar_lea.vmem [#allocation8], %s2062
        // Predicated region
        $region45: #{tpu_custom_call.1} parent=31 // pred_check
          %p2064 = pneg %p107
        $region46: #{tpu_custom_call.1} parent=31 // pred_check_branch
          %2066 = sbr.rel (%p2064) target = $region48
        $region47: #{tpu_custom_call.1} parent=31 // pred_region
          %s2067 = smul.u32 16, %s21
          %s2069 = ssub.s32 2048, 2048
          %2070 = vsyncadd %s2060, %s2069
          %s2071 = smul.addr %s2067, 128
          %s2072 = scalar_lea.hbm %s3, %s2071
          %s2073 = sshll.u32 %s2063, 4
          %s2074 = int_to_ptr.vmem [resolvable:$true] %s2073
          %2079 = dma.vmem_to_hbm [thread:$0]  %s2074, 2048, %s2072, %s2060, 128, 128, 8
        $region48: #{tpu_custom_call.1} parent=31 // pred_fallthru
          _
      $region32: #{tpu_custom_call.1} parent=5 // pred_fallthru
        _
      %p2080 = scmp.le.s32.totalorder 2, %s16
      // Predicated region
      $region49: #{tpu_custom_call.1} parent=5 // pred_check
        %p2081 = pneg %p2080
      $region50: #{tpu_custom_call.1} parent=5 // pred_check_branch
        %2083 = sbr.rel (%p2081) target = $region52
      $region51: #{tpu_custom_call.1} parent=5 // pred_region
        %s2084 = ssub.s32 %s16, 2
        // Predicated region
        $region53: #{tpu_custom_call.1} parent=51 // pred_check
          %p2085 = pneg %p113
        $region54: #{tpu_custom_call.1} parent=51 // pred_check_branch
          %2087 = sbr.rel (%p2085) target = $region56
        $region55: #{tpu_custom_call.1} parent=51 // pred_region
          %s2088 = sand.u32 %s98, 1
          %s2089 = scalar_lea.sflag [#allocation4], %s2088
          %s2090 = sand.u32 %s98, 1
          %s2091 = smul.addr %s2090, 128
          %s2092 = scalar_lea.vmem [#allocation8], %s2091
          %2093 = dma.done %s2089, 2048
        $region56: #{tpu_custom_call.1} parent=51 // pred_fallthru
          _
      $region52: #{tpu_custom_call.1} parent=5 // pred_fallthru
        _
    $region6: #{tpu_custom_call.1} parent=1 // loop_footer
      %s20 = sadd.s32 1, %s16
    $region7: #{tpu_custom_call.1} parent=1 // loop_footer_branch
      %15 = sbr.rel target = $region3
    $region8: #{tpu_custom_call.1} parent=1 // loop_exit
      _
    %2094 = vsyncpa [#allocation3], 1
    %s2095 = scalar_lea.sflag [#allocation3], 1
    %2096 = vsyncpa %s2095, 1
    %2097 = vsyncpa [#allocation6], 1
    %2098 = vsyncpa [#allocation4], 1
    %s2099 = scalar_lea.sflag [#allocation4], 1
    %2100 = vsyncpa %s2099, 1

</llo_original>
